<compile_context>
chip_gen: v5e
topology: v5e:2x2
jax: 0.10.0
libtpu: 0.0.40
codegen_flags: <defaults>
</compile_context>

<pallas_src>
import functools

import jax
import jax.numpy as jnp
import numpy as np
from jax import lax
from jax.experimental import pallas as pl
from jax.experimental.pallas import tpu as pltpu


# ---------------------------------------------------------------------------
# Static index map: padded-upsampled index -> pre-upsample source index.
# nearest upsample by integer `scale`, then ReflectionPad(rp) (PyTorch
# semantics: no edge repeat, single bounce).
# ---------------------------------------------------------------------------
def _reflect_upsample_map(src_len, scale, rp):
    up_len = src_len * scale
    idx = np.arange(up_len + 2 * rp) - rp
    idx = np.abs(idx)                                          # left reflection
    idx = np.where(idx >= up_len, 2 * up_len - 2 - idx, idx)   # right reflection
    return (idx // scale).astype(np.int64)


# ---------------------------------------------------------------------------
# Fused kernel: one (batch, Ho-row-tile) pair per grid step.
#   rmap_ref : SMEM (NT*TH+K-1,) int32  padded-row -> source-row map (prefetch)
#   x_ref    : (1, H, Cin, W)  f32      pre-upsample activations
#   gw_ref   : (W, Wp)         f32      one-hot W upsample+reflect gather
#   w_ref    : (Cout, K*K*Cin) bf16     conv weight, columns (kh, kw, ci)
#   b_ref    : (Cout, 1)       f32      bias
#   o_ref    : (1, 1, Cout, TH*Wp)      lane-dense flat output tile
#   flat_ref : VMEM (Cin, (TH+K-1)*Wp + K) f32  per-tile upsampled+padded image
# ---------------------------------------------------------------------------
def _upconv_kernel(rmap_ref, x_ref, gw_ref, w_ref, b_ref, o_ref, flat_ref, *,
                   cin, K, Wp, TH, dyn_scatter):
    t = pl.program_id(1)
    W = x_ref.shape[3]
    HALO = TH + K - 1
    gw = gw_ref[...]                                       # (W, Wp), resident

    def scatter_row(hp):
        # H upsample+reflect via the SMEM row map (only the rows this tile
        # needs); W upsample+reflect as one exact f32 one-hot gather matmul.
        r = rmap_ref[t * TH + hp]
        row = x_ref[0, pl.ds(r, 1)].reshape(cin, W)        # (Cin, W)
        flat_ref[:, pl.ds(hp * Wp, Wp)] = jnp.dot(
            row, gw, preferred_element_type=jnp.float32)

    if dyn_scatter:
        def body(hp, carry):
            scatter_row(hp)
            return carry
        lax.fori_loop(0, HALO, body, 0, unroll=False)      # counted, not unrolled
    else:
        for hp in range(HALO):                             # static fallback path
            scatter_row(hp)

    # Zero the tiny tail so the junk im2col columns read defined memory.
    flat_ref[:, pl.ds(HALO * Wp, K)] = jnp.zeros((cin, K), flat_ref.dtype)

    # im2col: each (kh, kw) tap is one contiguous lane-offset slice of the
    # per-tile flat image (columns t = ho*Wp + wo; wo >= Wo are junk columns
    # dropped in the wrapper).  Only TH rows worth of patches exist at a time.
    L = TH * Wp
    patches = jnp.concatenate(
        [flat_ref[:, pl.ds(kh * Wp + kw, L)]
         for kh in range(K) for kw in range(K)], axis=0)   # (K*K*Cin, TH*Wp) f32
    patches = patches.astype(jnp.bfloat16)                 # bf16 MXU operand

    acc = jnp.dot(w_ref[...], patches,
                  preferred_element_type=jnp.float32)      # (Cout, TH*Wp) f32
    o_ref[0, 0] = (acc + b_ref[...]).astype(o_ref.dtype)


def _pick_tile_h(Ho, H, W, Cin, Cout, K, Wp, vmem_limit):
    """Largest Ho row-tile whose per-step working set fits the VMEM budget."""
    budget = vmem_limit // 2
    fixed = (2 * H * Cin * W * 4          # double-buffered input block
             + W * Wp * 4                 # gather matrix
             + Cout * K * K * Cin * 2     # bf16 weights
             + Cout * 4 * 2)              # bias

    def per_tile(th):
        return (Cin * ((th + K - 1) * Wp + K) * 4   # flat image scratch
                + K * K * Cin * th * Wp * 6         # patches (f32 tmp + bf16)
                + 3 * Cout * th * Wp * 4)           # acc + 2x out buffers

    th = Ho
    while th > 8 and fixed + per_tile(th) > budget:
        th = max(8, (th + 1) // 2)
    return th


def upsample_reflect_conv(x_nchw, w2d, b2d, *, kernel_size, scale, tile_h=None):
    """Fused nearest-upsample(x scale) + ReflectionPad(K//2) + stride-1 VALID
    Conv2d.  x_nchw: (N, Cin, H, W).  Returns (N, Cout, Ho, Wo)."""
    N, Cin, H, W = x_nchw.shape
    K = kernel_size
    rp = K // 2
    Hs, Ws = H * scale, W * scale
    Hp, Wp = Hs + 2 * rp, Ws + 2 * rp
    Ho, Wo = Hp - K + 1, Wp - K + 1
    Cout = w2d.shape[0]

    # per-generation VMEM budget (v7x: 64 MiB physical, v5e/v6e: 128 MiB)
    try:
        vmem_cap = int(pltpu.get_tpu_info().vmem_capacity_bytes)
    except Exception:
        vmem_cap = 64 * 1024 * 1024
    vmem_limit = int(min(vmem_cap * 3 // 4, 100 * 1024 * 1024))

    TH = tile_h if tile_h is not None else _pick_tile_h(
        Ho, H, W, Cin, Cout, K, Wp, vmem_limit)
    TH = max(1, min(int(TH), Ho))
    NT = pl.cdiv(Ho, TH)
    HALO = TH + K - 1
    L = TH * Wp

    # Static reflect+upsample index maps (trace-time numpy).  rmap is padded so
    # an over-hanging last row tile still reads valid (clamped) source rows;
    # its extra output rows are dropped by the final crop.
    rmap = _reflect_upsample_map(H, scale, rp)              # length Hp
    need = NT * TH + K - 1
    if need > Hp:
        rmap = np.concatenate([rmap, np.full(need - Hp, rmap[-1], np.int64)])
    rmap = jnp.asarray(rmap[:need], dtype=jnp.int32)

    wmap = _reflect_upsample_map(W, scale, rp)
    gw_np = np.zeros((W, Wp), dtype=np.float32)
    gw_np[wmap, np.arange(Wp)] = 1.0
    gw = jnp.asarray(gw_np)

    # Small pre-upsample tensor re-laid out so channels sit on sublanes.
    x_hcw = jnp.transpose(x_nchw, (0, 2, 1, 3))             # (N, H, Cin, W)

    def build(dyn_scatter):
        kernel = functools.partial(_upconv_kernel, cin=Cin, K=K, Wp=Wp, TH=TH,
                                   dyn_scatter=dyn_scatter)
        return pl.pallas_call(
            kernel,
            out_shape=jax.ShapeDtypeStruct((N, NT, Cout, L), x_nchw.dtype),
            grid_spec=pltpu.PrefetchScalarGridSpec(
                num_scalar_prefetch=1,                      # rmap -> SMEM
                grid=(N, NT),
                in_specs=[
                    pl.BlockSpec((1, H, Cin, W), lambda n, t, rm: (n, 0, 0, 0)),
                    pl.BlockSpec((W, Wp), lambda n, t, rm: (0, 0)),             # resident
                    pl.BlockSpec((Cout, K * K * Cin), lambda n, t, rm: (0, 0)),  # resident
                    pl.BlockSpec((Cout, 1), lambda n, t, rm: (0, 0)),           # resident
                ],
                out_specs=pl.BlockSpec((1, 1, Cout, L),
                                       lambda n, t, rm: (n, t, 0, 0)),
                scratch_shapes=[pltpu.VMEM((Cin, HALO * Wp + K), jnp.float32)],
            ),
            compiler_params=pltpu.CompilerParams(
                dimension_semantics=("parallel", "parallel"),  # megacore-shardable
                vmem_limit_bytes=vmem_limit,
            ),
        )(rmap, x_hcw, gw, w2d, b2d)

    try:
        out = build(dyn_scatter=True)
    except Exception:
        # Fallback for Mosaic builds without dynamic minormost-dim stores: the
        # scatter loop is statically unrolled (HALO bodies, still per-row).
        out = build(dyn_scatter=False)

    # (N, NT, Cout, TH*Wp) -> (N, Cout, Ho, Wo): single fused transpose+crop.
    # TODO(synk): fuse this crop into the consumer / store Wo-wide NCHW rows
    # in-kernel when Wo % 128 == 0 to drop the last HBM round trip.
    out = out.reshape(N, NT, Cout, TH, Wp)
    out = jnp.transpose(out, (0, 2, 1, 3, 4)).reshape(N, Cout, NT * TH, Wp)
    return out[:, :, :Ho, :Wo]


# ---------------------------------------------------------------------------
# Module: UpsampleConvLayer
# ---------------------------------------------------------------------------
class UpsampleConvLayer:
    def __init__(self, in_channels, out_channels, kernel_size, stride,
                 upsample=None, key=None, tile_h=None):
        self.upsample = upsample
        self.kernel_size = kernel_size
        self.stride = stride
        self.reflection_padding = kernel_size // 2
        self.tile_h = tile_h
        # Deterministic Conv2d parameter init (PyTorch weight shape Cout,Cin,K,K)
        k_w, k_b = jax.random.split(key)
        fan_in = in_channels * kernel_size * kernel_size
        bound = 1.0 / np.sqrt(fan_in)
        w_oihw = jax.random.uniform(
            k_w, (out_channels, in_channels, kernel_size, kernel_size),
            jnp.float32, -bound, bound)
        self.bias = jax.random.uniform(k_b, (out_channels,), jnp.float32,
                                       -bound, bound)
        self.w_oihw = w_oihw  # f32, kept for the pure-JAX reference check
        # kernel-friendly layout: (Cout, K*K*Cin), columns (kh, kw, ci);
        # bf16 so the dominant conv matmul uses the native MXU path.
        self.w2d = jnp.transpose(w_oihw, (0, 2, 3, 1)).reshape(
            out_channels, kernel_size * kernel_size * in_channels
        ).astype(jnp.bfloat16)
        self.b2d = self.bias.reshape(out_channels, 1)

    @staticmethod
    def _pad_and_concat(x1, x2):
        # F.pad(x2, (diffX//2, diffX/2, diffY//2, diffY/2)) -- keep the original
        # module's pairing of H/W diffs with pad axes.  lax.pad also handles
        # negative diffs (crops), matching F.pad.
        diffX = x1.shape[2] - x2.shape[2]
        diffY = x1.shape[3] - x2.shape[3]
        zero = jnp.array(0, dtype=x2.dtype)
        x2 = lax.pad(x2, zero,
                     [(0, 0, 0), (0, 0, 0),
                      (diffY // 2, int(diffY / 2), 0),
                      (diffX // 2, int(diffX / 2), 0)])
        return jnp.concatenate([x2, x1], axis=1)

    def __call__(self, x1, x2):
        # x1, x2: NCHW (PyTorch convention)
        x = self._pad_and_concat(x1, x2)
        s = int(self.upsample) if self.upsample else 1
        out = upsample_reflect_conv(x, self.w2d, self.b2d,
                                    kernel_size=self.kernel_size, scale=s,
                                    tile_h=self.tile_h)
        if self.stride > 1:
            # strided conv == stride-1 conv subsampled (same padding)
            out = out[:, :, ::self.stride, ::self.stride]
        return out

    # pure-JAX/XLA reference (verification only)
    def reference(self, x1, x2):
        x = self._pad_and_concat(x1, x2)
        if self.upsample:
            s = int(self.upsample)
            x = jnp.repeat(jnp.repeat(x, s, axis=2), s, axis=3)
        rp = self.reflection_padding
        x = jnp.pad(x, ((0, 0), (0, 0), (rp, rp), (rp, rp)), mode="reflect")
        out = lax.conv_general_dilated(
            x, self.w_oihw, window_strides=(self.stride, self.stride),
            padding="VALID", dimension_numbers=("NCHW", "OIHW", "NCHW"))
        return out + self.bias.reshape(1, -1, 1, 1)


if __name__ == "__main__":
    key = jax.random.PRNGKey(0)
    k1, k2, kp = jax.random.split(key, 3)

    # small shapes: x1 is the larger feature map, x2 the one that gets padded
    x1 = jax.random.normal(k1, (2, 4, 16, 16), jnp.float32)   # N, C, H, W
    x2 = jax.random.normal(k2, (2, 4, 14, 14), jnp.float32)

    # tile_h=12 forces several Ho tiles including a padded edge tile (Ho=32),
    # exercising the row-tiled path; in_channels = C(x1) + C(x2) after concat.
    layer = UpsampleConvLayer(in_channels=8, out_channels=4,
                              kernel_size=3, stride=1, upsample=2, key=kp,
                              tile_h=12)

    out = jax.block_until_ready(layer(x1, x2))
    ref = jax.block_until_ready(layer.reference(x1, x2))

    assert out.shape == ref.shape == (2, 4, 32, 32), (out.shape, ref.shape)
    # bf16 conv operands (f32 accumulate) -> slightly looser tolerance than f32
    np.testing.assert_allclose(np.asarray(out), np.asarray(ref),
                               rtol=2e-2, atol=2e-2)
    print("KERNEL_OK")
</pallas_src>

<mosaic_0001>
module attributes {stable_mosaic.version = 11 : i64} {
  func.func @_upconv_kernel(%arg0: i32, %arg1: i32, %arg2: memref<38xi32, #tpu.memory_space<smem>>, %arg3: memref<1x16x8x16xf32, #tpu.memory_space<vmem>>, %arg4: memref<16x34xf32, #tpu.memory_space<vmem>>, %arg5: memref<4x72xbf16, #tpu.memory_space<vmem>>, %arg6: memref<4x1xf32, #tpu.memory_space<vmem>>, %arg7: memref<1x1x4x408xf32, #tpu.memory_space<vmem>>, %arg8: memref<8x479xf32, #tpu.memory_space<vmem>>) attributes {dimension_semantics = [#tpu.dimension_semantics<parallel>, #tpu.dimension_semantics<parallel>], iteration_bounds = array<i64: 2, 3>, scalar_prefetch = 1 : i64, scratch_operands = 1 : i64, tpu.core_type = #tpu.core_type<tc>, window_params = [{transform_indices = @transform_0, window_bounds = array<i64: 1, 16, 8, 16>}, {pipeline_mode = #tpu.pipeline_mode<synchronous>, transform_indices = @transform_1, window_bounds = array<i64: 16, 34>}, {pipeline_mode = #tpu.pipeline_mode<synchronous>, transform_indices = @transform_2, window_bounds = array<i64: 4, 72>}, {pipeline_mode = #tpu.pipeline_mode<synchronous>, transform_indices = @transform_3, window_bounds = array<i64: 4, 1>}, {transform_indices = @transform_4, window_bounds = array<i64: 1, 1, 4, 408>}]} {
    %c0 = arith.constant 0 : index
    %c0_0 = arith.constant 0 : index
    %0 = vector.load %arg4[%c0, %c0_0] : memref<16x34xf32, #tpu.memory_space<vmem>>, vector<16x34xf32>
    %c0_i32 = arith.constant 0 : i32
    %c14_i32 = arith.constant 14 : i32
    %1 = arith.addi %c0_i32, %c14_i32 : i32
    %c1_i32 = arith.constant 1 : i32
    scf.for %arg9 = %c0_i32 to %1 step %c1_i32  : i32 {
      %c12_i32 = arith.constant 12 : i32
      %23 = arith.muli %arg1, %c12_i32 : i32
      %24 = arith.addi %23, %arg9 : i32
      %25 = arith.index_cast %24 : i32 to index
      %26 = memref.load %arg2[%25] : memref<38xi32, #tpu.memory_space<smem>>
      %c0_22 = arith.constant 0 : index
      %27 = arith.index_cast %26 : i32 to index
      %c0_23 = arith.constant 0 : index
      %c0_24 = arith.constant 0 : index
      %28 = vector.load %arg3[%c0_22, %27, %c0_23, %c0_24] : memref<1x16x8x16xf32, #tpu.memory_space<vmem>>, vector<1x1x8x16xf32>
      %29 = vector.shape_cast %28 : vector<1x1x8x16xf32> to vector<1x8x16xf32>
      %30 = vector.shape_cast %29 : vector<1x8x16xf32> to vector<8x16xf32>
      %cst_25 = arith.constant dense<0.000000e+00> : vector<8x34xf32>
      %31 = tpu.matmul %30, %0, %cst_25 {dimension_numbers = #tpu.dot_dimension_numbers<[1], [0], [0], [1], [0, 0, 1, 1], [], []>} : vector<8x16xf32>, vector<16x34xf32>, vector<8x34xf32> -> vector<8x34xf32>
      %c34_i32 = arith.constant 34 : i32
      %32 = arith.muli %arg9, %c34_i32 : i32
      %c0_26 = arith.constant 0 : index
      %33 = arith.index_cast %32 : i32 to index
      %34 = vector.load %arg8[%c0_26, %33] : memref<8x479xf32, #tpu.memory_space<vmem>>, vector<8x34xf32>
      tpu.vector_store %arg8[%c0_26, %33], %31 {strides = array<i32>} : memref<8x479xf32, #tpu.memory_space<vmem>>, vector<8x34xf32>,
    }
    %c14_i32_1 = arith.constant 14 : i32
    %cst = arith.constant 0.000000e+00 : f32
    %2 = vector.broadcast %cst : f32 to vector<8x3xf32>
    %c0_2 = arith.constant 0 : index
    %c476 = arith.constant 476 : index
    %3 = vector.load %arg8[%c0_2, %c476] : memref<8x479xf32, #tpu.memory_space<vmem>>, vector<8x3xf32>
    tpu.vector_store %arg8[%c0_2, %c476], %2 {strides = array<i32>} : memref<8x479xf32, #tpu.memory_space<vmem>>, vector<8x3xf32>,
    %c0_3 = arith.constant 0 : index
    %c0_4 = arith.constant 0 : index
    %4 = vector.load %arg8[%c0_3, %c0_4] : memref<8x479xf32, #tpu.memory_space<vmem>>, vector<8x408xf32>
    %c0_5 = arith.constant 0 : index
    %c1 = arith.constant 1 : index
    %5 = vector.load %arg8[%c0_5, %c1] : memref<8x479xf32, #tpu.memory_space<vmem>>, vector<8x408xf32>
    %c0_6 = arith.constant 0 : index
    %c2 = arith.constant 2 : index
    %6 = vector.load %arg8[%c0_6, %c2] : memref<8x479xf32, #tpu.memory_space<vmem>>, vector<8x408xf32>
    %c0_7 = arith.constant 0 : index
    %c34 = arith.constant 34 : index
    %7 = vector.load %arg8[%c0_7, %c34] : memref<8x479xf32, #tpu.memory_space<vmem>>, vector<8x408xf32>
    %c0_8 = arith.constant 0 : index
    %c35 = arith.constant 35 : index
    %8 = vector.load %arg8[%c0_8, %c35] : memref<8x479xf32, #tpu.memory_space<vmem>>, vector<8x408xf32>
    %c0_9 = arith.constant 0 : index
    %c36 = arith.constant 36 : index
    %9 = vector.load %arg8[%c0_9, %c36] : memref<8x479xf32, #tpu.memory_space<vmem>>, vector<8x408xf32>
    %c0_10 = arith.constant 0 : index
    %c68 = arith.constant 68 : index
    %10 = vector.load %arg8[%c0_10, %c68] : memref<8x479xf32, #tpu.memory_space<vmem>>, vector<8x408xf32>
    %c0_11 = arith.constant 0 : index
    %c69 = arith.constant 69 : index
    %11 = vector.load %arg8[%c0_11, %c69] : memref<8x479xf32, #tpu.memory_space<vmem>>, vector<8x408xf32>
    %c0_12 = arith.constant 0 : index
    %c70 = arith.constant 70 : index
    %12 = vector.load %arg8[%c0_12, %c70] : memref<8x479xf32, #tpu.memory_space<vmem>>, vector<8x408xf32>
    %13 = tpu.concatenate %4, %5, %6, %7, %8, %9, %10, %11, %12 in 0 : vector<8x408xf32>, vector<8x408xf32>, vector<8x408xf32>, vector<8x408xf32>, vector<8x408xf32>, vector<8x408xf32>, vector<8x408xf32>, vector<8x408xf32>, vector<8x408xf32> -> vector<72x408xf32>
    %14 = arith.truncf %13 : vector<72x408xf32> to vector<72x408xbf16>
    %c0_13 = arith.constant 0 : index
    %c0_14 = arith.constant 0 : index
    %15 = vector.load %arg5[%c0_13, %c0_14] : memref<4x72xbf16, #tpu.memory_space<vmem>>, vector<4x72xbf16>
    %cst_15 = arith.constant dense<0.000000e+00> : vector<4x408xf32>
    %16 = tpu.matmul %15, %14, %cst_15 {dimension_numbers = #tpu.dot_dimension_numbers<[1], [0], [0], [1], [0, 0, 1, 1], [], []>} : vector<4x72xbf16>, vector<72x408xbf16>, vector<4x408xf32> -> vector<4x408xf32>
    %c0_16 = arith.constant 0 : index
    %c0_17 = arith.constant 0 : index
    %17 = vector.load %arg6[%c0_16, %c0_17] : memref<4x1xf32, #tpu.memory_space<vmem>>, vector<4x1xf32>
    %18 = vector.broadcast %17 : vector<4x1xf32> to vector<4x408xf32>
    %19 = arith.addf %16, %18 : vector<4x408xf32>
    %c0_18 = arith.constant 0 : index
    %c0_19 = arith.constant 0 : index
    %c0_20 = arith.constant 0 : index
    %c0_21 = arith.constant 0 : index
    %20 = vector.load %arg7[%c0_18, %c0_19, %c0_20, %c0_21] : memref<1x1x4x408xf32, #tpu.memory_space<vmem>>, vector<1x1x4x408xf32>
    %21 = vector.shape_cast %20 : vector<1x1x4x408xf32> to vector<4x408xf32>
    %22 = vector.shape_cast %19 : vector<4x408xf32> to vector<1x1x4x408xf32>
    tpu.vector_store %arg7[%c0_18, %c0_19, %c0_20, %c0_21], %22 {strides = array<i32>} : memref<1x1x4x408xf32, #tpu.memory_space<vmem>>, vector<1x1x4x408xf32>,
    return
  }
  func.func @transform_0(%arg0: i32, %arg1: i32, %arg2: memref<38xi32, #tpu.memory_space<smem>>) -> (i32, i32, i32, i32) {
    %c0_i32 = arith.constant 0 : i32
    %c0_i32_0 = arith.constant 0 : i32
    %c0_i32_1 = arith.constant 0 : i32
    %c0_i32_2 = arith.constant 0 : i32
    return %arg0, %c0_i32, %c0_i32_0, %c0_i32_1 : i32, i32, i32, i32
  }
  func.func @transform_1(%arg0: i32, %arg1: i32, %arg2: memref<38xi32, #tpu.memory_space<smem>>) -> (i32, i32) {
    %c0_i32 = arith.constant 0 : i32
    %c0_i32_0 = arith.constant 0 : i32
    %c0_i32_1 = arith.constant 0 : i32
    return %c0_i32, %c0_i32_0 : i32, i32
  }
  func.func @transform_2(%arg0: i32, %arg1: i32, %arg2: memref<38xi32, #tpu.memory_space<smem>>) -> (i32, i32) {
    %c0_i32 = arith.constant 0 : i32
    %c0_i32_0 = arith.constant 0 : i32
    %c0_i32_1 = arith.constant 0 : i32
    return %c0_i32, %c0_i32_0 : i32, i32
  }
  func.func @transform_3(%arg0: i32, %arg1: i32, %arg2: memref<38xi32, #tpu.memory_space<smem>>) -> (i32, i32) {
    %c0_i32 = arith.constant 0 : i32
    %c0_i32_0 = arith.constant 0 : i32
    %c0_i32_1 = arith.constant 0 : i32
    return %c0_i32, %c0_i32_0 : i32, i32
  }
  func.func @transform_4(%arg0: i32, %arg1: i32, %arg2: memref<38xi32, #tpu.memory_space<smem>>) -> (i32, i32, i32, i32) {
    %c0_i32 = arith.constant 0 : i32
    %c0_i32_0 = arith.constant 0 : i32
    %c0_i32_1 = arith.constant 0 : i32
    return %arg0, %arg1, %c0_i32, %c0_i32_0 : i32, i32, i32, i32
  }
}

module attributes {stable_mosaic.version = 11 : i64} {
  func.func @_upconv_kernel(%arg0: i32, %arg1: i32, %arg2: memref<38xi32, #tpu.memory_space<smem>>, %arg3: memref<1x16x8x16xf32, #tpu.memory_space<vmem>>, %arg4: memref<16x34xf32, #tpu.memory_space<vmem>>, %arg5: memref<4x72xbf16, #tpu.memory_space<vmem>>, %arg6: memref<4x1xf32, #tpu.memory_space<vmem>>, %arg7: memref<1x1x4x408xf32, #tpu.memory_space<vmem>>, %arg8: memref<8x479xf32, #tpu.memory_space<vmem>>) attributes {dimension_semantics = [#tpu.dimension_semantics<parallel>, #tpu.dimension_semantics<parallel>], iteration_bounds = array<i64: 2, 3>, scalar_prefetch = 1 : i64, scratch_operands = 1 : i64, tpu.core_type = #tpu.core_type<tc>, window_params = [{transform_indices = @transform_0, window_bounds = array<i64: 1, 16, 8, 16>}, {pipeline_mode = #tpu.pipeline_mode<synchronous>, transform_indices = @transform_1, window_bounds = array<i64: 16, 34>}, {pipeline_mode = #tpu.pipeline_mode<synchronous>, transform_indices = @transform_2, window_bounds = array<i64: 4, 72>}, {pipeline_mode = #tpu.pipeline_mode<synchronous>, transform_indices = @transform_3, window_bounds = array<i64: 4, 1>}, {transform_indices = @transform_4, window_bounds = array<i64: 1, 1, 4, 408>}]} {
    %c0 = arith.constant 0 : index
    %c0_0 = arith.constant 0 : index
    %0 = vector.load %arg4[%c0, %c0_0] : memref<16x34xf32, #tpu.memory_space<vmem>>, vector<16x34xf32>
    %c12_i32 = arith.constant 12 : i32
    %1 = arith.muli %arg1, %c12_i32 : i32
    %c0_i32 = arith.constant 0 : i32
    %2 = arith.addi %1, %c0_i32 : i32
    %3 = arith.index_cast %2 : i32 to index
    %4 = memref.load %arg2[%3] : memref<38xi32, #tpu.memory_space<smem>>
    %c0_1 = arith.constant 0 : index
    %5 = arith.index_cast %4 : i32 to index
    %c0_2 = arith.constant 0 : index
    %c0_3 = arith.constant 0 : index
    %6 = vector.load %arg3[%c0_1, %5, %c0_2, %c0_3] : memref<1x16x8x16xf32, #tpu.memory_space<vmem>>, vector<1x1x8x16xf32>
    %7 = vector.shape_cast %6 : vector<1x1x8x16xf32> to vector<1x8x16xf32>
    %8 = vector.shape_cast %7 : vector<1x8x16xf32> to vector<8x16xf32>
    %cst = arith.constant dense<0.000000e+00> : vector<8x34xf32>
    %9 = tpu.matmul %8, %0, %cst {dimension_numbers = #tpu.dot_dimension_numbers<[1], [0], [0], [1], [0, 0, 1, 1], [], []>} : vector<8x16xf32>, vector<16x34xf32>, vector<8x34xf32> -> vector<8x34xf32>
    %c0_4 = arith.constant 0 : index
    %c0_5 = arith.constant 0 : index
    %10 = vector.load %arg8[%c0_4, %c0_5] : memref<8x479xf32, #tpu.memory_space<vmem>>, vector<8x34xf32>
    tpu.vector_store %arg8[%c0_4, %c0_5], %9 {strides = array<i32>} : memref<8x479xf32, #tpu.memory_space<vmem>>, vector<8x34xf32>,
    %c12_i32_6 = arith.constant 12 : i32
    %11 = arith.muli %arg1, %c12_i32_6 : i32
    %c1_i32 = arith.constant 1 : i32
    %12 = arith.addi %11, %c1_i32 : i32
    %13 = arith.index_cast %12 : i32 to index
    %14 = memref.load %arg2[%13] : memref<38xi32, #tpu.memory_space<smem>>
    %c0_7 = arith.constant 0 : index
    %15 = arith.index_cast %14 : i32 to index
    %c0_8 = arith.constant 0 : index
    %c0_9 = arith.constant 0 : index
    %16 = vector.load %arg3[%c0_7, %15, %c0_8, %c0_9] : memref<1x16x8x16xf32, #tpu.memory_space<vmem>>, vector<1x1x8x16xf32>
    %17 = vector.shape_cast %16 : vector<1x1x8x16xf32> to vector<1x8x16xf32>
    %18 = vector.shape_cast %17 : vector<1x8x16xf32> to vector<8x16xf32>
    %cst_10 = arith.constant dense<0.000000e+00> : vector<8x34xf32>
    %19 = tpu.matmul %18, %0, %cst_10 {dimension_numbers = #tpu.dot_dimension_numbers<[1], [0], [0], [1], [0, 0, 1, 1], [], []>} : vector<8x16xf32>, vector<16x34xf32>, vector<8x34xf32> -> vector<8x34xf32>
    %c0_11 = arith.constant 0 : index
    %c34 = arith.constant 34 : index
    %20 = vector.load %arg8[%c0_11, %c34] : memref<8x479xf32, #tpu.memory_space<vmem>>, vector<8x34xf32>
    tpu.vector_store %arg8[%c0_11, %c34], %19 {strides = array<i32>} : memref<8x479xf32, #tpu.memory_space<vmem>>, vector<8x34xf32>,
    %c12_i32_12 = arith.constant 12 : i32
    %21 = arith.muli %arg1, %c12_i32_12 : i32
    %c2_i32 = arith.constant 2 : i32
    %22 = arith.addi %21, %c2_i32 : i32
    %23 = arith.index_cast %22 : i32 to index
    %24 = memref.load %arg2[%23] : memref<38xi32, #tpu.memory_space<smem>>
    %c0_13 = arith.constant 0 : index
    %25 = arith.index_cast %24 : i32 to index
    %c0_14 = arith.constant 0 : index
    %c0_15 = arith.constant 0 : index
    %26 = vector.load %arg3[%c0_13, %25, %c0_14, %c0_15] : memref<1x16x8x16xf32, #tpu.memory_space<vmem>>, vector<1x1x8x16xf32>
    %27 = vector.shape_cast %26 : vector<1x1x8x16xf32> to vector<1x8x16xf32>
    %28 = vector.shape_cast %27 : vector<1x8x16xf32> to vector<8x16xf32>
    %cst_16 = arith.constant dense<0.000000e+00> : vector<8x34xf32>
    %29 = tpu.matmul %28, %0, %cst_16 {dimension_numbers = #tpu.dot_dimension_numbers<[1], [0], [0], [1], [0, 0, 1, 1], [], []>} : vector<8x16xf32>, vector<16x34xf32>, vector<8x34xf32> -> vector<8x34xf32>
    %c0_17 = arith.constant 0 : index
    %c68 = arith.constant 68 : index
    %30 = vector.load %arg8[%c0_17, %c68] : memref<8x479xf32, #tpu.memory_space<vmem>>, vector<8x34xf32>
    tpu.vector_store %arg8[%c0_17, %c68], %29 {strides = array<i32>} : memref<8x479xf32, #tpu.memory_space<vmem>>, vector<8x34xf32>,
    %c12_i32_18 = arith.constant 12 : i32
    %31 = arith.muli %arg1, %c12_i32_18 : i32
    %c3_i32 = arith.constant 3 : i32
    %32 = arith.addi %31, %c3_i32 : i32
    %33 = arith.index_cast %32 : i32 to index
    %34 = memref.load %arg2[%33] : memref<38xi32, #tpu.memory_space<smem>>
    %c0_19 = arith.constant 0 : index
    %35 = arith.index_cast %34 : i32 to index
    %c0_20 = arith.constant 0 : index
    %c0_21 = arith.constant 0 : index
    %36 = vector.load %arg3[%c0_19, %35, %c0_20, %c0_21] : memref<1x16x8x16xf32, #tpu.memory_space<vmem>>, vector<1x1x8x16xf32>
    %37 = vector.shape_cast %36 : vector<1x1x8x16xf32> to vector<1x8x16xf32>
    %38 = vector.shape_cast %37 : vector<1x8x16xf32> to vector<8x16xf32>
    %cst_22 = arith.constant dense<0.000000e+00> : vector<8x34xf32>
    %39 = tpu.matmul %38, %0, %cst_22 {dimension_numbers = #tpu.dot_dimension_numbers<[1], [0], [0], [1], [0, 0, 1, 1], [], []>} : vector<8x16xf32>, vector<16x34xf32>, vector<8x34xf32> -> vector<8x34xf32>
    %c0_23 = arith.constant 0 : index
    %c102 = arith.constant 102 : index
    %40 = vector.load %arg8[%c0_23, %c102] : memref<8x479xf32, #tpu.memory_space<vmem>>, vector<8x34xf32>
    tpu.vector_store %arg8[%c0_23, %c102], %39 {strides = array<i32>} : memref<8x479xf32, #tpu.memory_space<vmem>>, vector<8x34xf32>,
    %c12_i32_24 = arith.constant 12 : i32
    %41 = arith.muli %arg1, %c12_i32_24 : i32
    %c4_i32 = arith.constant 4 : i32
    %42 = arith.addi %41, %c4_i32 : i32
    %43 = arith.index_cast %42 : i32 to index
    %44 = memref.load %arg2[%43] : memref<38xi32, #tpu.memory_space<smem>>
    %c0_25 = arith.constant 0 : index
    %45 = arith.index_cast %44 : i32 to index
    %c0_26 = arith.constant 0 : index
    %c0_27 = arith.constant 0 : index
    %46 = vector.load %arg3[%c0_25, %45, %c0_26, %c0_27] : memref<1x16x8x16xf32, #tpu.memory_space<vmem>>, vector<1x1x8x16xf32>
    %47 = vector.shape_cast %46 : vector<1x1x8x16xf32> to vector<1x8x16xf32>
    %48 = vector.shape_cast %47 : vector<1x8x16xf32> to vector<8x16xf32>
    %cst_28 = arith.constant dense<0.000000e+00> : vector<8x34xf32>
    %49 = tpu.matmul %48, %0, %cst_28 {dimension_numbers = #tpu.dot_dimension_numbers<[1], [0], [0], [1], [0, 0, 1, 1], [], []>} : vector<8x16xf32>, vector<16x34xf32>, vector<8x34xf32> -> vector<8x34xf32>
    %c0_29 = arith.constant 0 : index
    %c136 = arith.constant 136 : index
    %50 = vector.load %arg8[%c0_29, %c136] : memref<8x479xf32, #tpu.memory_space<vmem>>, vector<8x34xf32>
    tpu.vector_store %arg8[%c0_29, %c136], %49 {strides = array<i32>} : memref<8x479xf32, #tpu.memory_space<vmem>>, vector<8x34xf32>,
    %c12_i32_30 = arith.constant 12 : i32
    %51 = arith.muli %arg1, %c12_i32_30 : i32
    %c5_i32 = arith.constant 5 : i32
    %52 = arith.addi %51, %c5_i32 : i32
    %53 = arith.index_cast %52 : i32 to index
    %54 = memref.load %arg2[%53] : memref<38xi32, #tpu.memory_space<smem>>
    %c0_31 = arith.constant 0 : index
    %55 = arith.index_cast %54 : i32 to index
    %c0_32 = arith.constant 0 : index
    %c0_33 = arith.constant 0 : index
    %56 = vector.load %arg3[%c0_31, %55, %c0_32, %c0_33] : memref<1x16x8x16xf32, #tpu.memory_space<vmem>>, vector<1x1x8x16xf32>
    %57 = vector.shape_cast %56 : vector<1x1x8x16xf32> to vector<1x8x16xf32>
    %58 = vector.shape_cast %57 : vector<1x8x16xf32> to vector<8x16xf32>
    %cst_34 = arith.constant dense<0.000000e+00> : vector<8x34xf32>
    %59 = tpu.matmul %58, %0, %cst_34 {dimension_numbers = #tpu.dot_dimension_numbers<[1], [0], [0], [1], [0, 0, 1, 1], [], []>} : vector<8x16xf32>, vector<16x34xf32>, vector<8x34xf32> -> vector<8x34xf32>
    %c0_35 = arith.constant 0 : index
    %c170 = arith.constant 170 : index
    %60 = vector.load %arg8[%c0_35, %c170] : memref<8x479xf32, #tpu.memory_space<vmem>>, vector<8x34xf32>
    tpu.vector_store %arg8[%c0_35, %c170], %59 {strides = array<i32>} : memref<8x479xf32, #tpu.memory_space<vmem>>, vector<8x34xf32>,
    %c12_i32_36 = arith.constant 12 : i32
    %61 = arith.muli %arg1, %c12_i32_36 : i32
    %c6_i32 = arith.constant 6 : i32
    %62 = arith.addi %61, %c6_i32 : i32
    %63 = arith.index_cast %62 : i32 to index
    %64 = memref.load %arg2[%63] : memref<38xi32, #tpu.memory_space<smem>>
    %c0_37 = arith.constant 0 : index
    %65 = arith.index_cast %64 : i32 to index
    %c0_38 = arith.constant 0 : index
    %c0_39 = arith.constant 0 : index
    %66 = vector.load %arg3[%c0_37, %65, %c0_38, %c0_39] : memref<1x16x8x16xf32, #tpu.memory_space<vmem>>, vector<1x1x8x16xf32>
    %67 = vector.shape_cast %66 : vector<1x1x8x16xf32> to vector<1x8x16xf32>
    %68 = vector.shape_cast %67 : vector<1x8x16xf32> to vector<8x16xf32>
    %cst_40 = arith.constant dense<0.000000e+00> : vector<8x34xf32>
    %69 = tpu.matmul %68, %0, %cst_40 {dimension_numbers = #tpu.dot_dimension_numbers<[1], [0], [0], [1], [0, 0, 1, 1], [], []>} : vector<8x16xf32>, vector<16x34xf32>, vector<8x34xf32> -> vector<8x34xf32>
    %c0_41 = arith.constant 0 : index
    %c204 = arith.constant 204 : index
    %70 = vector.load %arg8[%c0_41, %c204] : memref<8x479xf32, #tpu.memory_space<vmem>>, vector<8x34xf32>
    tpu.vector_store %arg8[%c0_41, %c204], %69 {strides = array<i32>} : memref<8x479xf32, #tpu.memory_space<vmem>>, vector<8x34xf32>,
    %c12_i32_42 = arith.constant 12 : i32
    %71 = arith.muli %arg1, %c12_i32_42 : i32
    %c7_i32 = arith.constant 7 : i32
    %72 = arith.addi %71, %c7_i32 : i32
    %73 = arith.index_cast %72 : i32 to index
    %74 = memref.load %arg2[%73] : memref<38xi32, #tpu.memory_space<smem>>
    %c0_43 = arith.constant 0 : index
    %75 = arith.index_cast %74 : i32 to index
    %c0_44 = arith.constant 0 : index
    %c0_45 = arith.constant 0 : index
    %76 = vector.load %arg3[%c0_43, %75, %c0_44, %c0_45] : memref<1x16x8x16xf32, #tpu.memory_space<vmem>>, vector<1x1x8x16xf32>
    %77 = vector.shape_cast %76 : vector<1x1x8x16xf32> to vector<1x8x16xf32>
    %78 = vector.shape_cast %77 : vector<1x8x16xf32> to vector<8x16xf32>
    %cst_46 = arith.constant dense<0.000000e+00> : vector<8x34xf32>
    %79 = tpu.matmul %78, %0, %cst_46 {dimension_numbers = #tpu.dot_dimension_numbers<[1], [0], [0], [1], [0, 0, 1, 1], [], []>} : vector<8x16xf32>, vector<16x34xf32>, vector<8x34xf32> -> vector<8x34xf32>
    %c0_47 = arith.constant 0 : index
    %c238 = arith.constant 238 : index
    %80 = vector.load %arg8[%c0_47, %c238] : memref<8x479xf32, #tpu.memory_space<vmem>>, vector<8x34xf32>
    tpu.vector_store %arg8[%c0_47, %c238], %79 {strides = array<i32>} : memref<8x479xf32, #tpu.memory_space<vmem>>, vector<8x34xf32>,
    %c12_i32_48 = arith.constant 12 : i32
    %81 = arith.muli %arg1, %c12_i32_48 : i32
    %c8_i32 = arith.constant 8 : i32
    %82 = arith.addi %81, %c8_i32 : i32
    %83 = arith.index_cast %82 : i32 to index
    %84 = memref.load %arg2[%83] : memref<38xi32, #tpu.memory_space<smem>>
    %c0_49 = arith.constant 0 : index
    %85 = arith.index_cast %84 : i32 to index
    %c0_50 = arith.constant 0 : index
    %c0_51 = arith.constant 0 : index
    %86 = vector.load %arg3[%c0_49, %85, %c0_50, %c0_51] : memref<1x16x8x16xf32, #tpu.memory_space<vmem>>, vector<1x1x8x16xf32>
    %87 = vector.shape_cast %86 : vector<1x1x8x16xf32> to vector<1x8x16xf32>
    %88 = vector.shape_cast %87 : vector<1x8x16xf32> to vector<8x16xf32>
    %cst_52 = arith.constant dense<0.000000e+00> : vector<8x34xf32>
    %89 = tpu.matmul %88, %0, %cst_52 {dimension_numbers = #tpu.dot_dimension_numbers<[1], [0], [0], [1], [0, 0, 1, 1], [], []>} : vector<8x16xf32>, vector<16x34xf32>, vector<8x34xf32> -> vector<8x34xf32>
    %c0_53 = arith.constant 0 : index
    %c272 = arith.constant 272 : index
    %90 = vector.load %arg8[%c0_53, %c272] : memref<8x479xf32, #tpu.memory_space<vmem>>, vector<8x34xf32>
    tpu.vector_store %arg8[%c0_53, %c272], %89 {strides = array<i32>} : memref<8x479xf32, #tpu.memory_space<vmem>>, vector<8x34xf32>,
    %c12_i32_54 = arith.constant 12 : i32
    %91 = arith.muli %arg1, %c12_i32_54 : i32
    %c9_i32 = arith.constant 9 : i32
    %92 = arith.addi %91, %c9_i32 : i32
    %93 = arith.index_cast %92 : i32 to index
    %94 = memref.load %arg2[%93] : memref<38xi32, #tpu.memory_space<smem>>
    %c0_55 = arith.constant 0 : index
    %95 = arith.index_cast %94 : i32 to index
    %c0_56 = arith.constant 0 : index
    %c0_57 = arith.constant 0 : index
    %96 = vector.load %arg3[%c0_55, %95, %c0_56, %c0_57] : memref<1x16x8x16xf32, #tpu.memory_space<vmem>>, vector<1x1x8x16xf32>
    %97 = vector.shape_cast %96 : vector<1x1x8x16xf32> to vector<1x8x16xf32>
    %98 = vector.shape_cast %97 : vector<1x8x16xf32> to vector<8x16xf32>
    %cst_58 = arith.constant dense<0.000000e+00> : vector<8x34xf32>
    %99 = tpu.matmul %98, %0, %cst_58 {dimension_numbers = #tpu.dot_dimension_numbers<[1], [0], [0], [1], [0, 0, 1, 1], [], []>} : vector<8x16xf32>, vector<16x34xf32>, vector<8x34xf32> -> vector<8x34xf32>
    %c0_59 = arith.constant 0 : index
    %c306 = arith.constant 306 : index
    %100 = vector.load %arg8[%c0_59, %c306] : memref<8x479xf32, #tpu.memory_space<vmem>>, vector<8x34xf32>
    tpu.vector_store %arg8[%c0_59, %c306], %99 {strides = array<i32>} : memref<8x479xf32, #tpu.memory_space<vmem>>, vector<8x34xf32>,
    %c12_i32_60 = arith.constant 12 : i32
    %101 = arith.muli %arg1, %c12_i32_60 : i32
    %c10_i32 = arith.constant 10 : i32
    %102 = arith.addi %101, %c10_i32 : i32
    %103 = arith.index_cast %102 : i32 to index
    %104 = memref.load %arg2[%103] : memref<38xi32, #tpu.memory_space<smem>>
    %c0_61 = arith.constant 0 : index
    %105 = arith.index_cast %104 : i32 to index
    %c0_62 = arith.constant 0 : index
    %c0_63 = arith.constant 0 : index
    %106 = vector.load %arg3[%c0_61, %105, %c0_62, %c0_63] : memref<1x16x8x16xf32, #tpu.memory_space<vmem>>, vector<1x1x8x16xf32>
    %107 = vector.shape_cast %106 : vector<1x1x8x16xf32> to vector<1x8x16xf32>
    %108 = vector.shape_cast %107 : vector<1x8x16xf32> to vector<8x16xf32>
    %cst_64 = arith.constant dense<0.000000e+00> : vector<8x34xf32>
    %109 = tpu.matmul %108, %0, %cst_64 {dimension_numbers = #tpu.dot_dimension_numbers<[1], [0], [0], [1], [0, 0, 1, 1], [], []>} : vector<8x16xf32>, vector<16x34xf32>, vector<8x34xf32> -> vector<8x34xf32>
    %c0_65 = arith.constant 0 : index
    %c340 = arith.constant 340 : index
    %110 = vector.load %arg8[%c0_65, %c340] : memref<8x479xf32, #tpu.memory_space<vmem>>, vector<8x34xf32>
    tpu.vector_store %arg8[%c0_65, %c340], %109 {strides = array<i32>} : memref<8x479xf32, #tpu.memory_space<vmem>>, vector<8x34xf32>,
    %c12_i32_66 = arith.constant 12 : i32
    %111 = arith.muli %arg1, %c12_i32_66 : i32
    %c11_i32 = arith.constant 11 : i32
    %112 = arith.addi %111, %c11_i32 : i32
    %113 = arith.index_cast %112 : i32 to index
    %114 = memref.load %arg2[%113] : memref<38xi32, #tpu.memory_space<smem>>
    %c0_67 = arith.constant 0 : index
    %115 = arith.index_cast %114 : i32 to index
    %c0_68 = arith.constant 0 : index
    %c0_69 = arith.constant 0 : index
    %116 = vector.load %arg3[%c0_67, %115, %c0_68, %c0_69] : memref<1x16x8x16xf32, #tpu.memory_space<vmem>>, vector<1x1x8x16xf32>
    %117 = vector.shape_cast %116 : vector<1x1x8x16xf32> to vector<1x8x16xf32>
    %118 = vector.shape_cast %117 : vector<1x8x16xf32> to vector<8x16xf32>
    %cst_70 = arith.constant dense<0.000000e+00> : vector<8x34xf32>
    %119 = tpu.matmul %118, %0, %cst_70 {dimension_numbers = #tpu.dot_dimension_numbers<[1], [0], [0], [1], [0, 0, 1, 1], [], []>} : vector<8x16xf32>, vector<16x34xf32>, vector<8x34xf32> -> vector<8x34xf32>
    %c0_71 = arith.constant 0 : index
    %c374 = arith.constant 374 : index
    %120 = vector.load %arg8[%c0_71, %c374] : memref<8x479xf32, #tpu.memory_space<vmem>>, vector<8x34xf32>
    tpu.vector_store %arg8[%c0_71, %c374], %119 {strides = array<i32>} : memref<8x479xf32, #tpu.memory_space<vmem>>, vector<8x34xf32>,
    %c12_i32_72 = arith.constant 12 : i32
    %121 = arith.muli %arg1, %c12_i32_72 : i32
    %c12_i32_73 = arith.constant 12 : i32
    %122 = arith.addi %121, %c12_i32_73 : i32
    %123 = arith.index_cast %122 : i32 to index
    %124 = memref.load %arg2[%123] : memref<38xi32, #tpu.memory_space<smem>>
    %c0_74 = arith.constant 0 : index
    %125 = arith.index_cast %124 : i32 to index
    %c0_75 = arith.constant 0 : index
    %c0_76 = arith.constant 0 : index
    %126 = vector.load %arg3[%c0_74, %125, %c0_75, %c0_76] : memref<1x16x8x16xf32, #tpu.memory_space<vmem>>, vector<1x1x8x16xf32>
    %127 = vector.shape_cast %126 : vector<1x1x8x16xf32> to vector<1x8x16xf32>
    %128 = vector.shape_cast %127 : vector<1x8x16xf32> to vector<8x16xf32>
    %cst_77 = arith.constant dense<0.000000e+00> : vector<8x34xf32>
    %129 = tpu.matmul %128, %0, %cst_77 {dimension_numbers = #tpu.dot_dimension_numbers<[1], [0], [0], [1], [0, 0, 1, 1], [], []>} : vector<8x16xf32>, vector<16x34xf32>, vector<8x34xf32> -> vector<8x34xf32>
    %c0_78 = arith.constant 0 : index
    %c408 = arith.constant 408 : index
    %130 = vector.load %arg8[%c0_78, %c408] : memref<8x479xf32, #tpu.memory_space<vmem>>, vector<8x34xf32>
    tpu.vector_store %arg8[%c0_78, %c408], %129 {strides = array<i32>} : memref<8x479xf32, #tpu.memory_space<vmem>>, vector<8x34xf32>,
    %c12_i32_79 = arith.constant 12 : i32
    %131 = arith.muli %arg1, %c12_i32_79 : i32
    %c13_i32 = arith.constant 13 : i32
    %132 = arith.addi %131, %c13_i32 : i32
    %133 = arith.index_cast %132 : i32 to index
    %134 = memref.load %arg2[%133] : memref<38xi32, #tpu.memory_space<smem>>
    %c0_80 = arith.constant 0 : index
    %135 = arith.index_cast %134 : i32 to index
    %c0_81 = arith.constant 0 : index
    %c0_82 = arith.constant 0 : index
    %136 = vector.load %arg3[%c0_80, %135, %c0_81, %c0_82] : memref<1x16x8x16xf32, #tpu.memory_space<vmem>>, vector<1x1x8x16xf32>
    %137 = vector.shape_cast %136 : vector<1x1x8x16xf32> to vector<1x8x16xf32>
    %138 = vector.shape_cast %137 : vector<1x8x16xf32> to vector<8x16xf32>
    %cst_83 = arith.constant dense<0.000000e+00> : vector<8x34xf32>
    %139 = tpu.matmul %138, %0, %cst_83 {dimension_numbers = #tpu.dot_dimension_numbers<[1], [0], [0], [1], [0, 0, 1, 1], [], []>} : vector<8x16xf32>, vector<16x34xf32>, vector<8x34xf32> -> vector<8x34xf32>
    %c0_84 = arith.constant 0 : index
    %c442 = arith.constant 442 : index
    %140 = vector.load %arg8[%c0_84, %c442] : memref<8x479xf32, #tpu.memory_space<vmem>>, vector<8x34xf32>
    tpu.vector_store %arg8[%c0_84, %c442], %139 {strides = array<i32>} : memref<8x479xf32, #tpu.memory_space<vmem>>, vector<8x34xf32>,
    %cst_85 = arith.constant 0.000000e+00 : f32
    %141 = vector.broadcast %cst_85 : f32 to vector<8x3xf32>
    %c0_86 = arith.constant 0 : index
    %c476 = arith.constant 476 : index
    %142 = vector.load %arg8[%c0_86, %c476] : memref<8x479xf32, #tpu.memory_space<vmem>>, vector<8x3xf32>
    tpu.vector_store %arg8[%c0_86, %c476], %141 {strides = array<i32>} : memref<8x479xf32, #tpu.memory_space<vmem>>, vector<8x3xf32>,
    %c0_87 = arith.constant 0 : index
    %c0_88 = arith.constant 0 : index
    %143 = vector.load %arg8[%c0_87, %c0_88] : memref<8x479xf32, #tpu.memory_space<vmem>>, vector<8x408xf32>
    %c0_89 = arith.constant 0 : index
    %c1 = arith.constant 1 : index
    %144 = vector.load %arg8[%c0_89, %c1] : memref<8x479xf32, #tpu.memory_space<vmem>>, vector<8x408xf32>
    %c0_90 = arith.constant 0 : index
    %c2 = arith.constant 2 : index
    %145 = vector.load %arg8[%c0_90, %c2] : memref<8x479xf32, #tpu.memory_space<vmem>>, vector<8x408xf32>
    %c0_91 = arith.constant 0 : index
    %c34_92 = arith.constant 34 : index
    %146 = vector.load %arg8[%c0_91, %c34_92] : memref<8x479xf32, #tpu.memory_space<vmem>>, vector<8x408xf32>
    %c0_93 = arith.constant 0 : index
    %c35 = arith.constant 35 : index
    %147 = vector.load %arg8[%c0_93, %c35] : memref<8x479xf32, #tpu.memory_space<vmem>>, vector<8x408xf32>
    %c0_94 = arith.constant 0 : index
    %c36 = arith.constant 36 : index
    %148 = vector.load %arg8[%c0_94, %c36] : memref<8x479xf32, #tpu.memory_space<vmem>>, vector<8x408xf32>
    %c0_95 = arith.constant 0 : index
    %c68_96 = arith.constant 68 : index
    %149 = vector.load %arg8[%c0_95, %c68_96] : memref<8x479xf32, #tpu.memory_space<vmem>>, vector<8x408xf32>
    %c0_97 = arith.constant 0 : index
    %c69 = arith.constant 69 : index
    %150 = vector.load %arg8[%c0_97, %c69] : memref<8x479xf32, #tpu.memory_space<vmem>>, vector<8x408xf32>
    %c0_98 = arith.constant 0 : index
    %c70 = arith.constant 70 : index
    %151 = vector.load %arg8[%c0_98, %c70] : memref<8x479xf32, #tpu.memory_space<vmem>>, vector<8x408xf32>
    %152 = tpu.concatenate %143, %144, %145, %146, %147, %148, %149, %150, %151 in 0 : vector<8x408xf32>, vector<8x408xf32>, vector<8x408xf32>, vector<8x408xf32>, vector<8x408xf32>, vector<8x408xf32>, vector<8x408xf32>, vector<8x408xf32>, vector<8x408xf32> -> vector<72x408xf32>
    %153 = arith.truncf %152 : vector<72x408xf32> to vector<72x408xbf16>
    %c0_99 = arith.constant 0 : index
    %c0_100 = arith.constant 0 : index
    %154 = vector.load %arg5[%c0_99, %c0_100] : memref<4x72xbf16, #tpu.memory_space<vmem>>, vector<4x72xbf16>
    %cst_101 = arith.constant dense<0.000000e+00> : vector<4x408xf32>
    %155 = tpu.matmul %154, %153, %cst_101 {dimension_numbers = #tpu.dot_dimension_numbers<[1], [0], [0], [1], [0, 0, 1, 1], [], []>} : vector<4x72xbf16>, vector<72x408xbf16>, vector<4x408xf32> -> vector<4x408xf32>
    %c0_102 = arith.constant 0 : index
    %c0_103 = arith.constant 0 : index
    %156 = vector.load %arg6[%c0_102, %c0_103] : memref<4x1xf32, #tpu.memory_space<vmem>>, vector<4x1xf32>
    %157 = vector.broadcast %156 : vector<4x1xf32> to vector<4x408xf32>
    %158 = arith.addf %155, %157 : vector<4x408xf32>
    %c0_104 = arith.constant 0 : index
    %c0_105 = arith.constant 0 : index
    %c0_106 = arith.constant 0 : index
    %c0_107 = arith.constant 0 : index
    %159 = vector.load %arg7[%c0_104, %c0_105, %c0_106, %c0_107] : memref<1x1x4x408xf32, #tpu.memory_space<vmem>>, vector<1x1x4x408xf32>
    %160 = vector.shape_cast %159 : vector<1x1x4x408xf32> to vector<4x408xf32>
    %161 = vector.shape_cast %158 : vector<4x408xf32> to vector<1x1x4x408xf32>
    tpu.vector_store %arg7[%c0_104, %c0_105, %c0_106, %c0_107], %161 {strides = array<i32>} : memref<1x1x4x408xf32, #tpu.memory_space<vmem>>, vector<1x1x4x408xf32>,
    return
  }
  func.func @transform_0(%arg0: i32, %arg1: i32, %arg2: memref<38xi32, #tpu.memory_space<smem>>) -> (i32, i32, i32, i32) {
    %c0_i32 = arith.constant 0 : i32
    %c0_i32_0 = arith.constant 0 : i32
    %c0_i32_1 = arith.constant 0 : i32
    %c0_i32_2 = arith.constant 0 : i32
    return %arg0, %c0_i32, %c0_i32_0, %c0_i32_1 : i32, i32, i32, i32
  }
  func.func @transform_1(%arg0: i32, %arg1: i32, %arg2: memref<38xi32, #tpu.memory_space<smem>>) -> (i32, i32) {
    %c0_i32 = arith.constant 0 : i32
    %c0_i32_0 = arith.constant 0 : i32
    %c0_i32_1 = arith.constant 0 : i32
    return %c0_i32, %c0_i32_0 : i32, i32
  }
  func.func @transform_2(%arg0: i32, %arg1: i32, %arg2: memref<38xi32, #tpu.memory_space<smem>>) -> (i32, i32) {
    %c0_i32 = arith.constant 0 : i32
    %c0_i32_0 = arith.constant 0 : i32
    %c0_i32_1 = arith.constant 0 : i32
    return %c0_i32, %c0_i32_0 : i32, i32
  }
  func.func @transform_3(%arg0: i32, %arg1: i32, %arg2: memref<38xi32, #tpu.memory_space<smem>>) -> (i32, i32) {
    %c0_i32 = arith.constant 0 : i32
    %c0_i32_0 = arith.constant 0 : i32
    %c0_i32_1 = arith.constant 0 : i32
    return %c0_i32, %c0_i32_0 : i32, i32
  }
  func.func @transform_4(%arg0: i32, %arg1: i32, %arg2: memref<38xi32, #tpu.memory_space<smem>>) -> (i32, i32, i32, i32) {
    %c0_i32 = arith.constant 0 : i32
    %c0_i32_0 = arith.constant 0 : i32
    %c0_i32_1 = arith.constant 0 : i32
    return %arg0, %arg1, %c0_i32, %c0_i32_0 : i32, i32, i32, i32
  }
}

</mosaic_0001>

<llo_original>
// kernel: tpu_custom_call.1
$region0: #{tpu_custom_call.1}
  #allocation0 [shape = 'u32[]', space=smem, size = 0x4, offset = 0x4, fixed_abs, tag = 'smem constant byte address 0x4 - core index']
  #allocation1 [shape = 'u32[72,128]{1,0:T(1,128)}', space=vmem, size = 0x9000, scoped, tag = 'internal scratch']
  #allocation2 [shape = 'f32[8,479]{1,0:T(8,128)}', space=vmem, size = 0x4000, scoped, tag = 'scratch operand']
  #allocation3 [shape = 's32[1]{0}', space=sflag, size = 0x4, scoped, tag = 'scoped memory for tpu_custom_call.1']
  #allocation4 [shape = 'u8[512]{0}', space=smem, size = 0x200, scoped, tag = 'prefetched SMEM operand 0']
  %s0 = inlined_call_operand.vmem [shape: s32[38], index: 0, kind: input, shape index: {}]
  %s1 = inlined_call_operand.hbm [shape: f32[2,16,8,16], index: 1, kind: input, shape index: {}]
  %s2 = inlined_call_operand.hbm [shape: f32[16,34], index: 2, kind: input, shape index: {}]
  %s3 = inlined_call_operand.vmem [shape: bf16[4,72], index: 3, kind: input, shape index: {}]
  %s4 = inlined_call_operand.vmem [shape: f32[4,1], index: 4, kind: input, shape index: {}]
  %s5 = inlined_call_operand.hbm [shape: f32[2,3,4,408], index: 5, kind: output, shape index: {}]
  %s6 = sld [smem:[#allocation0]]
  $region57: #{tpu_custom_call.1} parent=0
    _
  %s8 = ssub.s32 1, %s6
  %s9 = scalar_select 0, %s8, %s6
  %s11 = sshll.u32 %s0, 4
  %s12 = int_to_ptr.vmem [resolvable:$true] %s11
  %14 = dma.vmem_to_smem %s12, 16, [#allocation4], [#allocation3]
  %16 = dma.done [#allocation3], 16
  %17 = sfence
  $region1: #{tpu_custom_call.1} parent=0
    #allocation5 [shape = 'u8[131072]{0}', space=vmem, size = 0x20000, scoped, tag = 'input window, operand 1']
    #allocation6 [shape = 's32[2]{0}', space=sflag, size = 0x8, scoped, tag = 'scoped memory for tpu_custom_call.1']
    #allocation7 [shape = 's32[2]{0}', space=sflag, size = 0x8, scoped, tag = 'scoped memory for tpu_custom_call.1']
    #allocation8 [shape = 'u8[8192]{0}', space=vmem, size = 0x2000, scoped, tag = 'input window, operand 2, single buffered']
    #allocation9 [shape = 's32[1]{0}', space=sflag, size = 0x4, scoped, tag = 'scoped memory for tpu_custom_call.1']
    #allocation10 [shape = 'u8[16384]{0}', space=vmem, size = 0x4000, scoped, tag = 'output window, operand 0']
    %18 = vsyncpa [#allocation6], 0
    %s19 = scalar_lea.sflag [#allocation6], 1
    %20 = vsyncpa %s19, 0
    %21 = vsyncpa [#allocation9], 0
    %22 = vsyncpa [#allocation7], 0
    %s23 = scalar_lea.sflag [#allocation7], 1
    %24 = vsyncpa %s23, 0
    loop: start=0, step=1, limit=8
    $region2: #{tpu_custom_call.1} parent=1 // loop_pre_header
      _
    $region3: #{tpu_custom_call.1} parent=1 // loop_header
      %s26 = sphi 0, %s30
      %p27 = scmp.ge.s32.totalorder %s26, 8
      %s33 = sphi 0, %s45
      %s34 = sphi 0, %s41
      %s35 = sphi 0, %s33
      %s36 = sphi 0, %s34
      %s37 = sphi 0, %s35
      %s38 = sphi 0, %s36
      %s48 = sphi 0, %s50
      %s51 = sphi 0, %s48
      %s52 = sphi 0, %s51
      %s68 = sphi 0, %s52
      %s72 = sphi 0, %s72
      %s74 = sphi 0, %s72
      %s75 = sphi 0, %s74
      %s89 = sphi 0, %s75
      %s93 = sphi 0, %s93
      %s95 = sphi 0, %s93
      %s96 = sphi 0, %s95
      %s110 = sphi 0, %s96
      %s114 = sphi 0, %s114
      %s116 = sphi 0, %s114
      %s117 = sphi 0, %s116
      %s131 = sphi 0, %s117
      %s139 = sphi 0, %s141
      %s142 = sphi 0, %s139
      %s143 = sphi 0, %s142
      %s159 = sphi 0, %s143
    $region4: #{tpu_custom_call.1} parent=1 // loop_header_branch
      %29 = sbr.rel (%p27) target = $region8
    $region5: #{tpu_custom_call.1} parent=1 // loop_body
      %s31 = ssub.s32 %s26, 1
      %s32 = ssub.s32 %s26, 2
      %s39 = sadd.s32 1, %s34
      %p40 = scmp.ge.s32.totalorder %s39, 3
      %s41 = scalar_select %p40, 0, %s39
      %s42 = sadd.s32 1, %s33
      %s43 = scalar_select %p40, %s42, %s33
      %p44 = scmp.ge.s32.totalorder %s43, 2
      %s45 = scalar_select %p44, 0, %s43
      %s46 = ssub.s32 %s33, %s45
      %p47 = scmp.eq.s32.totalorder %s46, 0
      %s49 = sadd.s32 %s48, 1
      %s50 = scalar_select %p47, %s48, %s49
      %p53 = pneg %p47
      %p54 = scmp.eq.s32.totalorder %s26, 5
      %p55 = por %p53, %p54
      %p56 = scmp.ne.s32.totalorder %s48, %s51
      %p57 = scmp.eq.s32.totalorder %s26, 0
      %p58 = por %p56, %p57
      %p59 = scmp.ne.s32.totalorder %s48, %s51
      %p60 = scmp.eq.s32.totalorder %s31, 5
      %p61 = por %p59, %p60
      %p62 = scmp.ne.s32.totalorder %s51, %s52
      %p63 = scmp.eq.s32.totalorder %s31, 0
      %p64 = por %p62, %p63
      %p65 = scmp.ne.s32.totalorder %s51, %s52
      %p66 = scmp.eq.s32.totalorder %s32, 5
      %p67 = por %p65, %p66
      %p69 = scmp.ne.s32.totalorder %s52, %s68
      %p70 = scmp.eq.s32.totalorder %s32, 0
      %p71 = por %p69, %p70
      %s73 = sadd.s32 %s72, 1
      %p76 = scmp.eq.s32.totalorder %s26, 5
      %p77 = scmp.ne.s32.totalorder %s72, %s74
      %p78 = scmp.eq.s32.totalorder %s26, 0
      %p79 = por %p77, %p78
      %p80 = scmp.ne.s32.totalorder %s72, %s74
      %p81 = scmp.eq.s32.totalorder %s31, 5
      %p82 = por %p80, %p81
      %p83 = scmp.ne.s32.totalorder %s74, %s75
      %p84 = scmp.eq.s32.totalorder %s31, 0
      %p85 = por %p83, %p84
      %p86 = scmp.ne.s32.totalorder %s74, %s75
      %p87 = scmp.eq.s32.totalorder %s32, 5
      %p88 = por %p86, %p87
      %p90 = scmp.ne.s32.totalorder %s75, %s89
      %p91 = scmp.eq.s32.totalorder %s32, 0
      %p92 = por %p90, %p91
      %s94 = sadd.s32 %s93, 1
      %p97 = scmp.eq.s32.totalorder %s26, 5
      %p98 = scmp.ne.s32.totalorder %s93, %s95
      %p99 = scmp.eq.s32.totalorder %s26, 0
      %p100 = por %p98, %p99
      %p101 = scmp.ne.s32.totalorder %s93, %s95
      %p102 = scmp.eq.s32.totalorder %s31, 5
      %p103 = por %p101, %p102
      %p104 = scmp.ne.s32.totalorder %s95, %s96
      %p105 = scmp.eq.s32.totalorder %s31, 0
      %p106 = por %p104, %p105
      %p107 = scmp.ne.s32.totalorder %s95, %s96
      %p108 = scmp.eq.s32.totalorder %s32, 5
      %p109 = por %p107, %p108
      %p111 = scmp.ne.s32.totalorder %s96, %s110
      %p112 = scmp.eq.s32.totalorder %s32, 0
      %p113 = por %p111, %p112
      %s115 = sadd.s32 %s114, 1
      %p118 = scmp.eq.s32.totalorder %s26, 5
      %p119 = scmp.ne.s32.totalorder %s114, %s116
      %p120 = scmp.eq.s32.totalorder %s26, 0
      %p121 = por %p119, %p120
      %p122 = scmp.ne.s32.totalorder %s114, %s116
      %p123 = scmp.eq.s32.totalorder %s31, 5
      %p124 = por %p122, %p123
      %p125 = scmp.ne.s32.totalorder %s116, %s117
      %p126 = scmp.eq.s32.totalorder %s31, 0
      %p127 = por %p125, %p126
      %p128 = scmp.ne.s32.totalorder %s116, %s117
      %p129 = scmp.eq.s32.totalorder %s32, 5
      %p130 = por %p128, %p129
      %p132 = scmp.ne.s32.totalorder %s117, %s131
      %p133 = scmp.eq.s32.totalorder %s32, 0
      %p134 = por %p132, %p133
      %s135 = ssub.s32 %s33, %s45
      %s136 = ssub.s32 %s34, %s41
      %s137 = sor.u32 %s135, %s136
      %p138 = scmp.eq.s32.totalorder %s137, 0
      %s140 = sadd.s32 %s139, 1
      %s141 = scalar_select %p138, %s139, %s140
      %p144 = pneg %p138
      %p145 = scmp.eq.s32.totalorder %s26, 5
      %p146 = por %p144, %p145
      %p147 = scmp.ne.s32.totalorder %s139, %s142
      %p148 = scmp.eq.s32.totalorder %s26, 0
      %p149 = por %p147, %p148
      %p150 = scmp.ne.s32.totalorder %s139, %s142
      %p151 = scmp.eq.s32.totalorder %s31, 5
      %p152 = por %p150, %p151
      %p153 = scmp.ne.s32.totalorder %s142, %s143
      %p154 = scmp.eq.s32.totalorder %s31, 0
      %p155 = por %p153, %p154
      %p156 = scmp.ne.s32.totalorder %s142, %s143
      %p157 = scmp.eq.s32.totalorder %s32, 5
      %p158 = por %p156, %p157
      %p160 = scmp.ne.s32.totalorder %s143, %s159
      %p161 = scmp.eq.s32.totalorder %s32, 0
      %p162 = por %p160, %p161
      %p163 = scmp.le.s32.totalorder 1, %s26
      %p164 = scmp.lt.s32.totalorder %s26, 7
      %p165 = pnand %p163, %p164
      %p166 = pneg %p165
      // Predicated region
      $region9: #{tpu_custom_call.1} parent=5 // pred_check
        _
      $region10: #{tpu_custom_call.1} parent=5 // pred_check_branch
        %168 = sbr.rel (%p165) target = $region12
      $region11: #{tpu_custom_call.1} parent=5 // pred_region
        %s169 = ssub.s32 %s26, 1
        // Predicated region
        $region13: #{tpu_custom_call.1} parent=11 // pred_check
          %p170 = pneg %p85
        $region14: #{tpu_custom_call.1} parent=11 // pred_check_branch
          %172 = sbr.rel (%p170) target = $region16
        $region15: #{tpu_custom_call.1} parent=11 // pred_region
          %174 = vsyncadd [#allocation9], 0
          %s175 = sshll.u32 %s2, 4
          %s176 = int_to_ptr.hbm [resolvable:$true] %s175
          %s177 = sshll.u32 [#allocation8], 4
          %s178 = int_to_ptr.vmem [resolvable:$true] %s177
          %183 = dma.hbm_to_vmem [thread:$0]  %s176, 256, %s178, [#allocation9], 128, 128, 8
        $region16: #{tpu_custom_call.1} parent=11 // pred_fallthru
          _
        // Predicated region
        $region17: #{tpu_custom_call.1} parent=11 // pred_check
          %p184 = pneg %p106
        $region18: #{tpu_custom_call.1} parent=11 // pred_check_branch
          %186 = sbr.rel (%p184) target = $region20
        $region19: #{tpu_custom_call.1} parent=11 // pred_region
          _
        $region20: #{tpu_custom_call.1} parent=11 // pred_fallthru
          _
        // Predicated region
        $region21: #{tpu_custom_call.1} parent=11 // pred_check
          %p187 = pneg %p127
        $region22: #{tpu_custom_call.1} parent=11 // pred_check_branch
          %189 = sbr.rel (%p187) target = $region24
        $region23: #{tpu_custom_call.1} parent=11 // pred_region
          _
        $region24: #{tpu_custom_call.1} parent=11 // pred_fallthru
          _
      $region12: #{tpu_custom_call.1} parent=5 // pred_fallthru
        _
      %p190 = scmp.lt.s32.totalorder %s26, 6
      // Predicated region
      $region25: #{tpu_custom_call.1} parent=5 // pred_check
        %p191 = pneg %p190
      $region26: #{tpu_custom_call.1} parent=5 // pred_check_branch
        %193 = sbr.rel (%p191) target = $region28
      $region27: #{tpu_custom_call.1} parent=5 // pred_region
        // Predicated region
        $region29: #{tpu_custom_call.1} parent=27 // pred_check
          %p194 = pneg %p58
        $region30: #{tpu_custom_call.1} parent=27 // pred_check_branch
          %196 = sbr.rel (%p194) target = $region32
        $region31: #{tpu_custom_call.1} parent=27 // pred_region
          %s197 = sand.u32 %s48, 1
          %s198 = scalar_lea.sflag [#allocation6], %s197
          %s199 = sand.u32 %s48, 1
          %s200 = smul.addr %s199, 128
          %s201 = scalar_lea.vmem [#allocation5], %s200
          %203 = vsyncadd %s198, 0
          %s204 = smul.addr %s33, 16
          %s205 = smul.addr %s204, 8
          %s206 = scalar_lea.hbm %s1, %s205
          %s207 = sshll.u32 %s206, 4
          %s208 = int_to_ptr.hbm [resolvable:$true] %s207
          %s209 = sshll.u32 %s201, 4
          %s210 = int_to_ptr.vmem [resolvable:$true] %s209
          %215 = dma.hbm_to_vmem [thread:$0]  %s208, 2048, %s210, %s198, 128, 128, 8
        $region32: #{tpu_custom_call.1} parent=27 // pred_fallthru
          _
      $region28: #{tpu_custom_call.1} parent=5 // pred_fallthru
        _
      %p216 = scmp.le.s32.totalorder 1, %s26
      %p217 = scmp.lt.s32.totalorder %s26, 7
      %p218 = pnand %p216, %p217
      %p219 = pneg %p218
      // Predicated region
      $region33: #{tpu_custom_call.1} parent=5 // pred_check
        _
      $region34: #{tpu_custom_call.1} parent=5 // pred_check_branch
        %221 = sbr.rel (%p218) target = $region36
      $region35: #{tpu_custom_call.1} parent=5 // pred_region
        %s222 = ssub.s32 %s26, 1
        %s223 = sand.u32 %s51, 1
        %s224 = scalar_lea.sflag [#allocation6], %s223
        %s225 = sand.u32 %s51, 1
        %s226 = smul.addr %s225, 128
        %s227 = scalar_lea.vmem [#allocation5], %s226
        // Predicated region
        $region37: #{tpu_custom_call.1} parent=35 // pred_check
          %p228 = pneg %p64
        $region38: #{tpu_custom_call.1} parent=35 // pred_check_branch
          %230 = sbr.rel (%p228) target = $region40
        $region39: #{tpu_custom_call.1} parent=35 // pred_region
          %232 = dma.done %s224, 2048
        $region40: #{tpu_custom_call.1} parent=35 // pred_fallthru
          _
        // Predicated region
        $region41: #{tpu_custom_call.1} parent=35 // pred_check
          %p233 = pneg %p85
        $region42: #{tpu_custom_call.1} parent=35 // pred_check_branch
          %235 = sbr.rel (%p233) target = $region44
        $region43: #{tpu_custom_call.1} parent=35 // pred_region
          %237 = dma.done [#allocation9], 256
        $region44: #{tpu_custom_call.1} parent=35 // pred_fallthru
          _
        %s238 = sand.u32 %s51, 1
        %s239 = scalar_lea.sflag [#allocation6], %s238
        %s240 = sand.u32 %s51, 1
        %s241 = smul.addr %s240, 128
        %s242 = scalar_lea.vmem [#allocation5], %s241
        %p243 = pneg %p64
        %p244 = pneg %p61
        %p245 = pneg %p85
        %p246 = pneg %p82
        %p247 = pneg %p106
        %p248 = pneg %p103
        %p249 = pneg %p127
        %p250 = pneg %p124
        %p251 = pneg %p155
        %p252 = pneg %p152
        %s253 = sand.u32 %s142, 1
        %s254 = scalar_lea.sflag [#allocation7], %s253
        %s255 = sand.u32 %s142, 1
        %s256 = smul.addr %s255, 16
        %s257 = scalar_lea.vmem [#allocation10], %s256
        %v259 = vld [vmem:[#allocation8] sm:$0xff]
        %v260 = vld [vmem:[#allocation8 + $0x8] sm:$0xff]
        %s261 = smul.u32 %s36, 12
        %s262 = sld [smem:[#allocation4 + %s261]]
        %s263 = smul.u32 %s262, 8
        %s264 = scalar_lea.vmem %s227, %s263 [#allocation5]
        %v265 = vld [vmem:[%s264] sm:$0xff]
        %vm266 = vcmask 130048
        %v268 = vsel %vm266, %v265, 0
        %270 = vmatpush.msra.mxu0 0.0
        %271 = vmatpush.msra.mxu0 0.0
        %272 = vmatpush.msra.mxu0 0.0
        %273 = vmatpush.msra.mxu0 0.0
        %274 = vmatpush.msra.mxu0 0.0
        %275 = vmatpush.msra.mxu0 0.0
        %276 = vmatpush.msra.mxu0 0.0
        %277 = vmatpush.msra.mxu0 0.0
        %278 = vmatpush.msra.mxu0 0.0
        %279 = vmatpush.msra.mxu0 0.0
        %280 = vmatpush.msra.mxu0 0.0
        %281 = vmatpush.msra.mxu0 0.0
        %282 = vmatpush.msra.mxu0 0.0
        %283 = vmatpush.msra.mxu0 0.0
        %284 = vmatpush.msra.mxu0 %v260
        %285 = vmatpush.msra.mxu0 %v259
        %286 = vmatmul.f32.gmra.mxu0 %v268
        %v287 = vpop.f32.mrf.mxu0
        %v288 = vadd.f32 0.0, %v287
        %289 = vdwg.mxu0
        %vm290 = vcmask 277504
        %291 = vst.msk [vmem:[#allocation2] sm:$0xff] %vm290, %v288
        %s292 = sadd.s32 %s261, 1
        %s293 = sld [smem:[#allocation4 + %s292]]
        %s294 = smul.u32 %s293, 8
        %s295 = scalar_lea.vmem %s227, %s294 [#allocation5]
        %v296 = vld [vmem:[%s295] sm:$0xff]
        %v298 = vsel %vm266, %v296, 0
        %300 = vmatpush.msra.mxu0 0.0
        %301 = vmatpush.msra.mxu0 0.0
        %302 = vmatpush.msra.mxu0 0.0
        %303 = vmatpush.msra.mxu0 0.0
        %304 = vmatpush.msra.mxu0 0.0
        %305 = vmatpush.msra.mxu0 0.0
        %306 = vmatpush.msra.mxu0 0.0
        %307 = vmatpush.msra.mxu0 0.0
        %308 = vmatpush.msra.mxu0 0.0
        %309 = vmatpush.msra.mxu0 0.0
        %310 = vmatpush.msra.mxu0 0.0
        %311 = vmatpush.msra.mxu0 0.0
        %312 = vmatpush.msra.mxu0 0.0
        %313 = vmatpush.msra.mxu0 0.0
        %314 = vmatpush.msra.mxu0 %v260
        %315 = vmatpush.msra.mxu0 %v259
        %316 = vmatmul.f32.gmra.mxu0 %v298
        %v317 = vpop.f32.mrf.mxu0
        %v318 = vadd.f32 0.0, %v317
        %319 = vdwg.mxu0
        %321 = vrot.lane.b32.xlu0 %v318, 34
        %v322 = vpop.permute.xlu0 %321
        %vm324 = vcmask 556304
        %325 = vst.msk [vmem:[#allocation2] sm:$0xff] %vm324, %v322
        %s326 = sadd.s32 %s261, 2
        %s327 = sld [smem:[#allocation4 + %s326]]
        %s328 = smul.u32 %s327, 8
        %s329 = scalar_lea.vmem %s227, %s328 [#allocation5]
        %v330 = vld [vmem:[%s329] sm:$0xff]
        %v332 = vsel %vm266, %v330, 0
        %334 = vmatpush.msra.mxu0 0.0
        %335 = vmatpush.msra.mxu0 0.0
        %336 = vmatpush.msra.mxu0 0.0
        %337 = vmatpush.msra.mxu0 0.0
        %338 = vmatpush.msra.mxu0 0.0
        %339 = vmatpush.msra.mxu0 0.0
        %340 = vmatpush.msra.mxu0 0.0
        %341 = vmatpush.msra.mxu0 0.0
        %342 = vmatpush.msra.mxu0 0.0
        %343 = vmatpush.msra.mxu0 0.0
        %344 = vmatpush.msra.mxu0 0.0
        %345 = vmatpush.msra.mxu0 0.0
        %346 = vmatpush.msra.mxu0 0.0
        %347 = vmatpush.msra.mxu0 0.0
        %348 = vmatpush.msra.mxu0 %v260
        %349 = vmatpush.msra.mxu0 %v259
        %350 = vmatmul.f32.gmra.mxu0 %v332
        %v351 = vpop.f32.mrf.mxu0
        %v352 = vadd.f32 0.0, %v351
        %353 = vdwg.mxu0
        %355 = vrot.lane.b32.xlu0 %v352, 68
        %v356 = vpop.permute.xlu0 %355
        %vm358 = vcmask 835104
        %359 = vst.msk [vmem:[#allocation2] sm:$0xff] %vm358, %v356
        %s360 = sadd.s32 %s261, 3
        %s361 = sld [smem:[#allocation4 + %s360]]
        %s362 = smul.u32 %s361, 8
        %s363 = scalar_lea.vmem %s227, %s362 [#allocation5]
        %v364 = vld [vmem:[%s363] sm:$0xff]
        %v366 = vsel %vm266, %v364, 0
        %368 = vmatpush.msra.mxu0 0.0
        %369 = vmatpush.msra.mxu0 0.0
        %370 = vmatpush.msra.mxu0 0.0
        %371 = vmatpush.msra.mxu0 0.0
        %372 = vmatpush.msra.mxu0 0.0
        %373 = vmatpush.msra.mxu0 0.0
        %374 = vmatpush.msra.mxu0 0.0
        %375 = vmatpush.msra.mxu0 0.0
        %376 = vmatpush.msra.mxu0 0.0
        %377 = vmatpush.msra.mxu0 0.0
        %378 = vmatpush.msra.mxu0 0.0
        %379 = vmatpush.msra.mxu0 0.0
        %380 = vmatpush.msra.mxu0 0.0
        %381 = vmatpush.msra.mxu0 0.0
        %382 = vmatpush.msra.mxu0 %v260
        %383 = vmatpush.msra.mxu0 %v259
        %384 = vmatmul.f32.gmra.mxu0 %v366
        %v385 = vpop.f32.mrf.mxu0
        %v386 = vadd.f32 0.0, %v385
        %387 = vdwg.mxu0
        %389 = vrot.lane.b32.xlu0 %v386, 102
        %v390 = vpop.permute.xlu0 %389
        %vm392 = vcmask 1048368
        %393 = vst.msk [vmem:[#allocation2] sm:$0xff] %vm392, %v390
        %vm394 = vcmask 64512
        %395 = vst.msk [vmem:[#allocation2 + $0x8] sm:$0xff] %vm394, %v390
        %s396 = sadd.s32 %s261, 4
        %s397 = sld [smem:[#allocation4 + %s396]]
        %s398 = smul.u32 %s397, 8
        %s399 = scalar_lea.vmem %s227, %s398 [#allocation5]
        %v400 = vld [vmem:[%s399] sm:$0xff]
        %v402 = vsel %vm266, %v400, 0
        %404 = vmatpush.msra.mxu0 0.0
        %405 = vmatpush.msra.mxu0 0.0
        %406 = vmatpush.msra.mxu0 0.0
        %407 = vmatpush.msra.mxu0 0.0
        %408 = vmatpush.msra.mxu0 0.0
        %409 = vmatpush.msra.mxu0 0.0
        %410 = vmatpush.msra.mxu0 0.0
        %411 = vmatpush.msra.mxu0 0.0
        %412 = vmatpush.msra.mxu0 0.0
        %413 = vmatpush.msra.mxu0 0.0
        %414 = vmatpush.msra.mxu0 0.0
        %415 = vmatpush.msra.mxu0 0.0
        %416 = vmatpush.msra.mxu0 0.0
        %417 = vmatpush.msra.mxu0 0.0
        %418 = vmatpush.msra.mxu0 %v260
        %419 = vmatpush.msra.mxu0 %v259
        %420 = vmatmul.f32.gmra.mxu0 %v402
        %v421 = vpop.f32.mrf.mxu0
        %v422 = vadd.f32 0.0, %v421
        %423 = vdwg.mxu0
        %425 = vrot.lane.b32.xlu0 %v422, 8
        %v426 = vpop.permute.xlu0 %425
        %vm428 = vcmask 343104
        %429 = vst.msk [vmem:[#allocation2 + $0x8] sm:$0xff] %vm428, %v426
        %s430 = sadd.s32 %s261, 5
        %s431 = sld [smem:[#allocation4 + %s430]]
        %s432 = smul.u32 %s431, 8
        %s433 = scalar_lea.vmem %s227, %s432 [#allocation5]
        %v434 = vld [vmem:[%s433] sm:$0xff]
        %v436 = vsel %vm266, %v434, 0
        %438 = vmatpush.msra.mxu0 0.0
        %439 = vmatpush.msra.mxu0 0.0
        %440 = vmatpush.msra.mxu0 0.0
        %441 = vmatpush.msra.mxu0 0.0
        %442 = vmatpush.msra.mxu0 0.0
        %443 = vmatpush.msra.mxu0 0.0
        %444 = vmatpush.msra.mxu0 0.0
        %445 = vmatpush.msra.mxu0 0.0
        %446 = vmatpush.msra.mxu0 0.0
        %447 = vmatpush.msra.mxu0 0.0
        %448 = vmatpush.msra.mxu0 0.0
        %449 = vmatpush.msra.mxu0 0.0
        %450 = vmatpush.msra.mxu0 0.0
        %451 = vmatpush.msra.mxu0 0.0
        %452 = vmatpush.msra.mxu0 %v260
        %453 = vmatpush.msra.mxu0 %v259
        %454 = vmatmul.f32.gmra.mxu0 %v436
        %v455 = vpop.f32.mrf.mxu0
        %v456 = vadd.f32 0.0, %v455
        %457 = vdwg.mxu0
        %459 = vrot.lane.b32.xlu0 %v456, 42
        %v460 = vpop.permute.xlu0 %459
        %vm462 = vcmask 621904
        %463 = vst.msk [vmem:[#allocation2 + $0x8] sm:$0xff] %vm462, %v460
        %s464 = sadd.s32 %s261, 6
        %s465 = sld [smem:[#allocation4 + %s464]]
        %s466 = smul.u32 %s465, 8
        %s467 = scalar_lea.vmem %s227, %s466 [#allocation5]
        %v468 = vld [vmem:[%s467] sm:$0xff]
        %v470 = vsel %vm266, %v468, 0
        %472 = vmatpush.msra.mxu0 0.0
        %473 = vmatpush.msra.mxu0 0.0
        %474 = vmatpush.msra.mxu0 0.0
        %475 = vmatpush.msra.mxu0 0.0
        %476 = vmatpush.msra.mxu0 0.0
        %477 = vmatpush.msra.mxu0 0.0
        %478 = vmatpush.msra.mxu0 0.0
        %479 = vmatpush.msra.mxu0 0.0
        %480 = vmatpush.msra.mxu0 0.0
        %481 = vmatpush.msra.mxu0 0.0
        %482 = vmatpush.msra.mxu0 0.0
        %483 = vmatpush.msra.mxu0 0.0
        %484 = vmatpush.msra.mxu0 0.0
        %485 = vmatpush.msra.mxu0 0.0
        %486 = vmatpush.msra.mxu0 %v260
        %487 = vmatpush.msra.mxu0 %v259
        %488 = vmatmul.f32.gmra.mxu0 %v470
        %v489 = vpop.f32.mrf.mxu0
        %v490 = vadd.f32 0.0, %v489
        %491 = vdwg.mxu0
        %493 = vrot.lane.b32.xlu0 %v490, 76
        %v494 = vpop.permute.xlu0 %493
        %vm496 = vcmask 900704
        %497 = vst.msk [vmem:[#allocation2 + $0x8] sm:$0xff] %vm496, %v494
        %s498 = sadd.s32 %s261, 7
        %s499 = sld [smem:[#allocation4 + %s498]]
        %s500 = smul.u32 %s499, 8
        %s501 = scalar_lea.vmem %s227, %s500 [#allocation5]
        %v502 = vld [vmem:[%s501] sm:$0xff]
        %v504 = vsel %vm266, %v502, 0
        %506 = vmatpush.msra.mxu0 0.0
        %507 = vmatpush.msra.mxu0 0.0
        %508 = vmatpush.msra.mxu0 0.0
        %509 = vmatpush.msra.mxu0 0.0
        %510 = vmatpush.msra.mxu0 0.0
        %511 = vmatpush.msra.mxu0 0.0
        %512 = vmatpush.msra.mxu0 0.0
        %513 = vmatpush.msra.mxu0 0.0
        %514 = vmatpush.msra.mxu0 0.0
        %515 = vmatpush.msra.mxu0 0.0
        %516 = vmatpush.msra.mxu0 0.0
        %517 = vmatpush.msra.mxu0 0.0
        %518 = vmatpush.msra.mxu0 0.0
        %519 = vmatpush.msra.mxu0 0.0
        %520 = vmatpush.msra.mxu0 %v260
        %521 = vmatpush.msra.mxu0 %v259
        %522 = vmatmul.f32.gmra.mxu0 %v504
        %v523 = vpop.f32.mrf.mxu0
        %v524 = vadd.f32 0.0, %v523
        %525 = vdwg.mxu0
        %527 = vrot.lane.b32.xlu0 %v524, 110
        %v528 = vpop.permute.xlu0 %527
        %vm530 = vcmask 1048432
        %531 = vst.msk [vmem:[#allocation2 + $0x8] sm:$0xff] %vm530, %v528
        %532 = vst.msk [vmem:[#allocation2 + $0x10] sm:$0xff] %vm266, %v528
        %s533 = sadd.s32 %s261, 8
        %s534 = sld [smem:[#allocation4 + %s533]]
        %s535 = smul.u32 %s534, 8
        %s536 = scalar_lea.vmem %s227, %s535 [#allocation5]
        %v537 = vld [vmem:[%s536] sm:$0xff]
        %v539 = vsel %vm266, %v537, 0
        %541 = vmatpush.msra.mxu0 0.0
        %542 = vmatpush.msra.mxu0 0.0
        %543 = vmatpush.msra.mxu0 0.0
        %544 = vmatpush.msra.mxu0 0.0
        %545 = vmatpush.msra.mxu0 0.0
        %546 = vmatpush.msra.mxu0 0.0
        %547 = vmatpush.msra.mxu0 0.0
        %548 = vmatpush.msra.mxu0 0.0
        %549 = vmatpush.msra.mxu0 0.0
        %550 = vmatpush.msra.mxu0 0.0
        %551 = vmatpush.msra.mxu0 0.0
        %552 = vmatpush.msra.mxu0 0.0
        %553 = vmatpush.msra.mxu0 0.0
        %554 = vmatpush.msra.mxu0 0.0
        %555 = vmatpush.msra.mxu0 %v260
        %556 = vmatpush.msra.mxu0 %v259
        %557 = vmatmul.f32.gmra.mxu0 %v539
        %v558 = vpop.f32.mrf.mxu0
        %v559 = vadd.f32 0.0, %v558
        %560 = vdwg.mxu0
        %562 = vrot.lane.b32.xlu0 %v559, 16
        %v563 = vpop.permute.xlu0 %562
        %vm565 = vcmask 408704
        %566 = vst.msk [vmem:[#allocation2 + $0x10] sm:$0xff] %vm565, %v563
        %s567 = sadd.s32 %s261, 9
        %s568 = sld [smem:[#allocation4 + %s567]]
        %s569 = smul.u32 %s568, 8
        %s570 = scalar_lea.vmem %s227, %s569 [#allocation5]
        %v571 = vld [vmem:[%s570] sm:$0xff]
        %v573 = vsel %vm266, %v571, 0
        %575 = vmatpush.msra.mxu0 0.0
        %576 = vmatpush.msra.mxu0 0.0
        %577 = vmatpush.msra.mxu0 0.0
        %578 = vmatpush.msra.mxu0 0.0
        %579 = vmatpush.msra.mxu0 0.0
        %580 = vmatpush.msra.mxu0 0.0
        %581 = vmatpush.msra.mxu0 0.0
        %582 = vmatpush.msra.mxu0 0.0
        %583 = vmatpush.msra.mxu0 0.0
        %584 = vmatpush.msra.mxu0 0.0
        %585 = vmatpush.msra.mxu0 0.0
        %586 = vmatpush.msra.mxu0 0.0
        %587 = vmatpush.msra.mxu0 0.0
        %588 = vmatpush.msra.mxu0 0.0
        %589 = vmatpush.msra.mxu0 %v260
        %590 = vmatpush.msra.mxu0 %v259
        %591 = vmatmul.f32.gmra.mxu0 %v573
        %v592 = vpop.f32.mrf.mxu0
        %v593 = vadd.f32 0.0, %v592
        %594 = vdwg.mxu0
        %596 = vrot.lane.b32.xlu0 %v593, 50
        %v597 = vpop.permute.xlu0 %596
        %vm599 = vcmask 687504
        %600 = vst.msk [vmem:[#allocation2 + $0x10] sm:$0xff] %vm599, %v597
        %s601 = sadd.s32 %s261, 10
        %s602 = sld [smem:[#allocation4 + %s601]]
        %s603 = smul.u32 %s602, 8
        %s604 = scalar_lea.vmem %s227, %s603 [#allocation5]
        %v605 = vld [vmem:[%s604] sm:$0xff]
        %v607 = vsel %vm266, %v605, 0
        %609 = vmatpush.msra.mxu0 0.0
        %610 = vmatpush.msra.mxu0 0.0
        %611 = vmatpush.msra.mxu0 0.0
        %612 = vmatpush.msra.mxu0 0.0
        %613 = vmatpush.msra.mxu0 0.0
        %614 = vmatpush.msra.mxu0 0.0
        %615 = vmatpush.msra.mxu0 0.0
        %616 = vmatpush.msra.mxu0 0.0
        %617 = vmatpush.msra.mxu0 0.0
        %618 = vmatpush.msra.mxu0 0.0
        %619 = vmatpush.msra.mxu0 0.0
        %620 = vmatpush.msra.mxu0 0.0
        %621 = vmatpush.msra.mxu0 0.0
        %622 = vmatpush.msra.mxu0 0.0
        %623 = vmatpush.msra.mxu0 %v260
        %624 = vmatpush.msra.mxu0 %v259
        %625 = vmatmul.f32.gmra.mxu0 %v607
        %v626 = vpop.f32.mrf.mxu0
        %v627 = vadd.f32 0.0, %v626
        %628 = vdwg.mxu0
        %630 = vrot.lane.b32.xlu0 %v627, 84
        %v631 = vpop.permute.xlu0 %630
        %vm633 = vcmask 966304
        %634 = vst.msk [vmem:[#allocation2 + $0x10] sm:$0xff] %vm633, %v631
        %s635 = sadd.s32 %s261, 11
        %s636 = sld [smem:[#allocation4 + %s635]]
        %s637 = smul.u32 %s636, 8
        %s638 = scalar_lea.vmem %s227, %s637 [#allocation5]
        %v639 = vld [vmem:[%s638] sm:$0xff]
        %v641 = vsel %vm266, %v639, 0
        %643 = vmatpush.msra.mxu0 0.0
        %644 = vmatpush.msra.mxu0 0.0
        %645 = vmatpush.msra.mxu0 0.0
        %646 = vmatpush.msra.mxu0 0.0
        %647 = vmatpush.msra.mxu0 0.0
        %648 = vmatpush.msra.mxu0 0.0
        %649 = vmatpush.msra.mxu0 0.0
        %650 = vmatpush.msra.mxu0 0.0
        %651 = vmatpush.msra.mxu0 0.0
        %652 = vmatpush.msra.mxu0 0.0
        %653 = vmatpush.msra.mxu0 0.0
        %654 = vmatpush.msra.mxu0 0.0
        %655 = vmatpush.msra.mxu0 0.0
        %656 = vmatpush.msra.mxu0 0.0
        %657 = vmatpush.msra.mxu0 %v260
        %658 = vmatpush.msra.mxu0 %v259
        %659 = vmatmul.f32.gmra.mxu0 %v641
        %v660 = vpop.f32.mrf.mxu0
        %v661 = vadd.f32 0.0, %v660
        %662 = vdwg.mxu0
        %664 = vrot.lane.b32.xlu0 %v661, 118
        %v665 = vpop.permute.xlu0 %664
        %vm667 = vcmask 1048496
        %668 = vst.msk [vmem:[#allocation2 + $0x10] sm:$0xff] %vm667, %v665
        %vm669 = vcmask 195584
        %670 = vst.msk [vmem:[#allocation2 + $0x18] sm:$0xff] %vm669, %v665
        %s671 = sadd.s32 %s261, 12
        %s672 = sld [smem:[#allocation4 + %s671]]
        %s673 = smul.u32 %s672, 8
        %s674 = scalar_lea.vmem %s227, %s673 [#allocation5]
        %v675 = vld [vmem:[%s674] sm:$0xff]
        %v677 = vsel %vm266, %v675, 0
        %679 = vmatpush.msra.mxu0 0.0
        %680 = vmatpush.msra.mxu0 0.0
        %681 = vmatpush.msra.mxu0 0.0
        %682 = vmatpush.msra.mxu0 0.0
        %683 = vmatpush.msra.mxu0 0.0
        %684 = vmatpush.msra.mxu0 0.0
        %685 = vmatpush.msra.mxu0 0.0
        %686 = vmatpush.msra.mxu0 0.0
        %687 = vmatpush.msra.mxu0 0.0
        %688 = vmatpush.msra.mxu0 0.0
        %689 = vmatpush.msra.mxu0 0.0
        %690 = vmatpush.msra.mxu0 0.0
        %691 = vmatpush.msra.mxu0 0.0
        %692 = vmatpush.msra.mxu0 0.0
        %693 = vmatpush.msra.mxu0 %v260
        %694 = vmatpush.msra.mxu0 %v259
        %695 = vmatmul.f32.gmra.mxu0 %v677
        %v696 = vpop.f32.mrf.mxu0
        %v697 = vadd.f32 0.0, %v696
        %698 = vdwg.mxu0
        %700 = vrot.lane.b32.xlu0 %v697, 24
        %v701 = vpop.permute.xlu0 %700
        %vm703 = vcmask 474304
        %704 = vst.msk [vmem:[#allocation2 + $0x18] sm:$0xff] %vm703, %v701
        %s705 = sadd.s32 %s261, 13
        %s706 = sld [smem:[#allocation4 + %s705]]
        %s707 = smul.u32 %s706, 8
        %s708 = scalar_lea.vmem %s227, %s707 [#allocation5]
        %v709 = vld [vmem:[%s708] sm:$0xff]
        %v711 = vsel %vm266, %v709, 0
        %713 = vmatpush.msra.mxu0 0.0
        %714 = vmatpush.msra.mxu0 0.0
        %715 = vmatpush.msra.mxu0 0.0
        %716 = vmatpush.msra.mxu0 0.0
        %717 = vmatpush.msra.mxu0 0.0
        %718 = vmatpush.msra.mxu0 0.0
        %719 = vmatpush.msra.mxu0 0.0
        %720 = vmatpush.msra.mxu0 0.0
        %721 = vmatpush.msra.mxu0 0.0
        %722 = vmatpush.msra.mxu0 0.0
        %723 = vmatpush.msra.mxu0 0.0
        %724 = vmatpush.msra.mxu0 0.0
        %725 = vmatpush.msra.mxu0 0.0
        %726 = vmatpush.msra.mxu0 0.0
        %727 = vmatpush.msra.mxu0 %v260
        %728 = vmatpush.msra.mxu0 %v259
        %729 = vmatmul.f32.gmra.mxu0 %v711
        %v730 = vpop.f32.mrf.mxu0
        %v731 = vadd.f32 0.0, %v730
        %732 = vdwg.mxu0
        %734 = vrot.lane.b32.xlu0 %v731, 58
        %v735 = vpop.permute.xlu0 %734
        %vm737 = vcmask 753104
        %738 = vst.msk [vmem:[#allocation2 + $0x18] sm:$0xff] %vm737, %v735
        %vm739 = vcmask 777952
        %740 = vst.msk [vmem:[#allocation2 + $0x18] sm:$0xff] %vm739, 0.0
        %v741 = vld [vmem:[#allocation2] sm:$0xff]
        %v742 = vld [vmem:[#allocation2 + $0x8] sm:$0xff]
        %v743 = vld [vmem:[#allocation2 + $0x10] sm:$0xff]
        %v744 = vld [vmem:[#allocation2 + $0x18] sm:$0xff]
        %749 = vrot.lane.b32.xlu0 %v741, 127
        %v750 = vpop.permute.xlu0 %749
        %751 = vrot.lane.b32.xlu0 %v742, 127
        %v752 = vpop.permute.xlu0 %751
        %753 = vrot.lane.b32.xlu0 %v743, 127
        %v754 = vpop.permute.xlu0 %753
        %755 = vrot.lane.b32.xlu0 %v744, 127
        %v756 = vpop.permute.xlu0 %755
        %vm757 = vcmask 1039360
        %v758 = vsel %vm757, %v750, %v752
        %v759 = vsel %vm757, %v752, %v754
        %v760 = vsel %vm757, %v754, %v756
        %765 = vrot.lane.b32.xlu0 %v741, 126
        %v766 = vpop.permute.xlu0 %765
        %767 = vrot.lane.b32.xlu0 %v742, 126
        %v768 = vpop.permute.xlu0 %767
        %769 = vrot.lane.b32.xlu0 %v743, 126
        %v770 = vpop.permute.xlu0 %769
        %771 = vrot.lane.b32.xlu0 %v744, 126
        %v772 = vpop.permute.xlu0 %771
        %vm773 = vcmask 1031168
        %v774 = vsel %vm773, %v766, %v768
        %v775 = vsel %vm773, %v768, %v770
        %v776 = vsel %vm773, %v770, %v772
        %781 = vrot.lane.b32.xlu0 %v741, 94
        %v782 = vpop.permute.xlu0 %781
        %783 = vrot.lane.b32.xlu0 %v742, 94
        %v784 = vpop.permute.xlu0 %783
        %785 = vrot.lane.b32.xlu0 %v743, 94
        %v786 = vpop.permute.xlu0 %785
        %787 = vrot.lane.b32.xlu0 %v744, 94
        %v788 = vpop.permute.xlu0 %787
        %vm789 = vcmask 769024
        %v790 = vsel %vm789, %v782, %v784
        %v791 = vsel %vm789, %v784, %v786
        %v792 = vsel %vm789, %v786, %v788
        %797 = vrot.lane.b32.xlu0 %v741, 93
        %v798 = vpop.permute.xlu0 %797
        %799 = vrot.lane.b32.xlu0 %v742, 93
        %v800 = vpop.permute.xlu0 %799
        %801 = vrot.lane.b32.xlu0 %v743, 93
        %v802 = vpop.permute.xlu0 %801
        %803 = vrot.lane.b32.xlu0 %v744, 93
        %v804 = vpop.permute.xlu0 %803
        %vm805 = vcmask 760832
        %v806 = vsel %vm805, %v798, %v800
        %v807 = vsel %vm805, %v800, %v802
        %v808 = vsel %vm805, %v802, %v804
        %813 = vrot.lane.b32.xlu0 %v741, 92
        %v814 = vpop.permute.xlu0 %813
        %815 = vrot.lane.b32.xlu0 %v742, 92
        %v816 = vpop.permute.xlu0 %815
        %817 = vrot.lane.b32.xlu0 %v743, 92
        %v818 = vpop.permute.xlu0 %817
        %819 = vrot.lane.b32.xlu0 %v744, 92
        %v820 = vpop.permute.xlu0 %819
        %vm821 = vcmask 752640
        %v822 = vsel %vm821, %v814, %v816
        %v823 = vsel %vm821, %v816, %v818
        %v824 = vsel %vm821, %v818, %v820
        %829 = vrot.lane.b32.xlu0 %v741, 60
        %v830 = vpop.permute.xlu0 %829
        %831 = vrot.lane.b32.xlu0 %v742, 60
        %v832 = vpop.permute.xlu0 %831
        %833 = vrot.lane.b32.xlu0 %v743, 60
        %v834 = vpop.permute.xlu0 %833
        %835 = vrot.lane.b32.xlu0 %v744, 60
        %v836 = vpop.permute.xlu0 %835
        %vm837 = vcmask 490496
        %v838 = vsel %vm837, %v830, %v832
        %v839 = vsel %vm837, %v832, %v834
        %v840 = vsel %vm837, %v834, %v836
        %845 = vrot.lane.b32.xlu0 %v741, 59
        %v846 = vpop.permute.xlu0 %845
        %847 = vrot.lane.b32.xlu0 %v742, 59
        %v848 = vpop.permute.xlu0 %847
        %849 = vrot.lane.b32.xlu0 %v743, 59
        %v850 = vpop.permute.xlu0 %849
        %851 = vrot.lane.b32.xlu0 %v744, 59
        %v852 = vpop.permute.xlu0 %851
        %vm853 = vcmask 482304
        %v854 = vsel %vm853, %v846, %v848
        %v855 = vsel %vm853, %v848, %v850
        %v856 = vsel %vm853, %v850, %v852
        %861 = vrot.lane.b32.xlu0 %v741, 58
        %v862 = vpop.permute.xlu0 %861
        %863 = vrot.lane.b32.xlu0 %v742, 58
        %v864 = vpop.permute.xlu0 %863
        %865 = vrot.lane.b32.xlu0 %v743, 58
        %v866 = vpop.permute.xlu0 %865
        %867 = vrot.lane.b32.xlu0 %v744, 58
        %v868 = vpop.permute.xlu0 %867
        %vm869 = vcmask 474112
        %v870 = vsel %vm869, %v862, %v864
        %v871 = vsel %vm869, %v864, %v866
        %v872 = vsel %vm869, %v866, %v868
        %v877 = vpack.c.bf16 %v758, %v741
        %v878 = vpack.c.bf16 %v759, %v742
        %v879 = vpack.c.bf16 %v760, %v743
        %v880 = vpack.c.bf16 %v756, %v744
        %v881 = vpack.c.bf16 %v790, %v774
        %v882 = vpack.c.bf16 %v791, %v775
        %v883 = vpack.c.bf16 %v792, %v776
        %v884 = vpack.c.bf16 %v788, %v772
        %v885 = vpack.c.bf16 %v822, %v806
        %v886 = vpack.c.bf16 %v823, %v807
        %v887 = vpack.c.bf16 %v824, %v808
        %v888 = vpack.c.bf16 %v820, %v804
        %v889 = vpack.c.bf16 %v854, %v838
        %v890 = vpack.c.bf16 %v855, %v839
        %v891 = vpack.c.bf16 %v856, %v840
        %v892 = vpack.c.bf16 %v852, %v836
        %v893 = vpack.c.bf16 %v870, %v870
        %v894 = vpack.c.bf16 %v871, %v871
        %v895 = vpack.c.bf16 %v872, %v872
        %v896 = vpack.c.bf16 %v868, %v868
        %v897 = vld [vmem:[%s3] sm:$0x3]
        %v898 = vld [vmem:[%s4] sm:$0xf]
        %900 = vset.pattern.permute.xlu0 0
        %901 = vperm.xlu0 %900, %v898
        %v902 = vpop.permute.xlu0 %901
        %vm904 = vcmask 588800
        %v906 = vsel %vm904, %v897, 0
        %vm908 = vcmask 1043456
        %v910 = vsel %vm908, %v893, 0
        %v913 = vsel %vm908, %v894, 0
        %v916 = vsel %vm908, %v895, 0
        %v919 = vsel %vm908, %v896, 0
        %921 = vmatpush.bf16.msra.mxu0 0
        %922 = vmatpush.bf16.msra.mxu0 0
        %923 = vmatpush.bf16.msra.mxu0 0
        %924 = vmatpush.bf16.msra.mxu0 %v910
        %925 = vmatpush.bf16.msra.mxu0 %v889
        %926 = vmatpush.bf16.msra.mxu0 %v885
        %927 = vmatpush.bf16.msra.mxu0 %v881
        %928 = vmatpush.bf16.msra.mxu0 %v877
        %929 = vmatmul.bf16.gmra.mxu0 %v906
        %v930 = vpop.f32.mrf.mxu0
        %v931 = vadd.f32 %v902, %v930
        %v932 = vpop.f32.mrf.mxu0
        %933 = vdwg.mxu0
        %934 = vmatpush.bf16.msra.mxu0 0
        %935 = vmatpush.bf16.msra.mxu0 0
        %936 = vmatpush.bf16.msra.mxu0 0
        %937 = vmatpush.bf16.msra.mxu0 %v913
        %938 = vmatpush.bf16.msra.mxu0 %v890
        %939 = vmatpush.bf16.msra.mxu0 %v886
        %940 = vmatpush.bf16.msra.mxu0 %v882
        %941 = vmatpush.bf16.msra.mxu0 %v878
        %942 = vmatmul.bf16.gmra.mxu0 %v906
        %v943 = vpop.f32.mrf.mxu0
        %v944 = vadd.f32 %v902, %v943
        %v945 = vpop.f32.mrf.mxu0
        %946 = vdwg.mxu0
        %947 = vmatpush.bf16.msra.mxu0 0
        %948 = vmatpush.bf16.msra.mxu0 0
        %949 = vmatpush.bf16.msra.mxu0 0
        %950 = vmatpush.bf16.msra.mxu0 %v916
        %951 = vmatpush.bf16.msra.mxu0 %v891
        %952 = vmatpush.bf16.msra.mxu0 %v887
        %953 = vmatpush.bf16.msra.mxu0 %v883
        %954 = vmatpush.bf16.msra.mxu0 %v879
        %955 = vmatmul.bf16.gmra.mxu0 %v906
        %v956 = vpop.f32.mrf.mxu0
        %v957 = vadd.f32 %v902, %v956
        %v958 = vpop.f32.mrf.mxu0
        %959 = vdwg.mxu0
        %960 = vmatpush.bf16.msra.mxu0 0
        %961 = vmatpush.bf16.msra.mxu0 0
        %962 = vmatpush.bf16.msra.mxu0 0
        %963 = vmatpush.bf16.msra.mxu0 %v919
        %964 = vmatpush.bf16.msra.mxu0 %v892
        %965 = vmatpush.bf16.msra.mxu0 %v888
        %966 = vmatpush.bf16.msra.mxu0 %v884
        %967 = vmatpush.bf16.msra.mxu0 %v880
        %968 = vmatmul.bf16.gmra.mxu0 %v906
        %v969 = vpop.f32.mrf.mxu0
        %v970 = vadd.f32 %v902, %v969
        %v971 = vpop.f32.mrf.mxu0
        %972 = vdwg.mxu0
        %v977 = vrot.slane %v944, 4
        %v978 = vrot.slane %v970, 4
        %v979 = vsel %vm908, %v931, %v977
        %v980 = vsel %vm908, %v957, %v978
        %983 = vst [vmem:[%s257] sm:$0xff] %v979
        %vm984 = vcmask 195588
        %vm985 = vmor %vm984, %vm908
        %986 = vst.msk [vmem:[%s257 + $0x8] sm:$0xff] %vm985, %v980
        %s987 = sand.u32 %s142, 1
        %s988 = scalar_lea.sflag [#allocation7], %s987
        %s989 = sand.u32 %s142, 1
        %s990 = smul.addr %s989, 16
        %s991 = scalar_lea.vmem [#allocation10], %s990
        // Predicated region
        $region45: #{tpu_custom_call.1} parent=35 // pred_check
          %p992 = pneg %p152
        $region46: #{tpu_custom_call.1} parent=35 // pred_check_branch
          %994 = sbr.rel (%p992) target = $region48
        $region47: #{tpu_custom_call.1} parent=35 // pred_region
          %996 = vsyncadd %s988, 0
          %s997 = smul.addr %s36, 4
          %s998 = smul.addr %s35, 12
          %s999 = sadd.s32 %s997, %s998
          %s1000 = smul.addr %s999, 4
          %s1001 = scalar_lea.hbm %s5, %s1000
          %s1003 = sshll.u32 %s991, 4
          %s1004 = int_to_ptr.vmem [resolvable:$true] %s1003
          %s1005 = sshll.u32 %s1001, 4
          %s1006 = int_to_ptr.hbm [resolvable:$true] %s1005
          %1008 = dma.vmem_to_hbm [thread:$0]  %s1004, 256, %s1006, %s988
        $region48: #{tpu_custom_call.1} parent=35 // pred_fallthru
          _
      $region36: #{tpu_custom_call.1} parent=5 // pred_fallthru
        _
      %p1009 = scmp.le.s32.totalorder 2, %s26
      // Predicated region
      $region49: #{tpu_custom_call.1} parent=5 // pred_check
        %p1010 = pneg %p1009
      $region50: #{tpu_custom_call.1} parent=5 // pred_check_branch
        %1012 = sbr.rel (%p1010) target = $region52
      $region51: #{tpu_custom_call.1} parent=5 // pred_region
        %s1013 = ssub.s32 %s26, 2
        // Predicated region
        $region53: #{tpu_custom_call.1} parent=51 // pred_check
          %p1014 = pneg %p158
        $region54: #{tpu_custom_call.1} parent=51 // pred_check_branch
          %1016 = sbr.rel (%p1014) target = $region56
        $region55: #{tpu_custom_call.1} parent=51 // pred_region
          %s1017 = sand.u32 %s143, 1
          %s1018 = scalar_lea.sflag [#allocation7], %s1017
          %s1019 = sand.u32 %s143, 1
          %s1020 = smul.addr %s1019, 16
          %s1021 = scalar_lea.vmem [#allocation10], %s1020
          %1023 = dma.done %s1018, 256
        $region56: #{tpu_custom_call.1} parent=51 // pred_fallthru
          _
      $region52: #{tpu_custom_call.1} parent=5 // pred_fallthru
        _
    $region6: #{tpu_custom_call.1} parent=1 // loop_footer
      %s30 = sadd.s32 1, %s26
    $region7: #{tpu_custom_call.1} parent=1 // loop_footer_branch
      %25 = sbr.rel target = $region3
    $region8: #{tpu_custom_call.1} parent=1 // loop_exit
      _
    %1024 = vsyncpa [#allocation6], 1
    %s1025 = scalar_lea.sflag [#allocation6], 1
    %1026 = vsyncpa %s1025, 1
    %1027 = vsyncpa [#allocation9], 1
    %1028 = vsyncpa [#allocation7], 1
    %s1029 = scalar_lea.sflag [#allocation7], 1
    %1030 = vsyncpa %s1029, 1

</llo_original>
